<compile_context>
chip_gen: v5e
topology: v5e:2x2
jax: 0.10.0
libtpu: 0.0.40
codegen_flags: <defaults>
</compile_context>

<pallas_src>
import jax
import jax.numpy as jnp
from jax import lax
from jax.experimental import pallas as pl
from jax.experimental.pallas import tpu as pltpu

_NUM_CLASSES = 10


# ---------------------------------------------------------------------------
# Fused Conv3x3(pad=1) + bias + MaxPool(3x3, stride 2) stage
# ---------------------------------------------------------------------------
def _conv_pool_kernel(p_ref, w_ref, b_ref, o_ref):
    # p_ref : (K, S)    bf16  im2col patches for pool-tap t at all pooled positions
    # w_ref : (Cout, K) bf16  K-stacked conv weights
    # b_ref : (Cout, 1) f32   conv bias
    # o_ref : (Cout, S) f32   pooled output (resident across the tap axis)
    t = pl.program_id(1)
    y = jnp.dot(w_ref[...], p_ref[...], preferred_element_type=jnp.float32)

    @pl.when(t == 0)
    def _():
        o_ref[...] = y

    @pl.when(t > 0)
    def _():
        o_ref[...] = jnp.maximum(o_ref[...], y)

    @pl.when(t == pl.num_programs(1) - 1)
    def _():
        o_ref[...] = o_ref[...] + b_ref[...]


def _pool_tap_patches(x, ph, pw):
    """Build im2col patches for fused conv3x3(pad=1) + maxpool3x3/s2.

    x: (N, Cin, H, W) f32.  Returns (N, 9, 9*Cin, ph*pw) bf16 where axis 1 is
    the pool tap (di, dj) and axis 2 is the conv contraction (cin, ki, kj).
    """
    n, cin, h, w = x.shape
    xp = jnp.pad(x, ((0, 0), (0, 0), (1, 1), (1, 1)))
    # conv im2col: c[n, cin*9 + ki*3 + kj, y, x] = xp[n, cin, y + ki, x + kj]
    cols = [xp[:, :, ki:ki + h, kj:kj + w] for ki in range(3) for kj in range(3)]
    c = jnp.stack(cols, axis=2).reshape(n, cin * 9, h, w)
    # pool taps on the conv-output grid: rows 2*r + di, cols 2*q + dj
    taps = [c[:, :, di:di + 2 * ph - 1:2, dj:dj + 2 * pw - 1:2]
            for di in range(3) for dj in range(3)]
    p = jnp.stack(taps, axis=1)                       # (N, 9, 9*Cin, ph, pw)
    return p.reshape(n, 9, cin * 9, ph * pw).astype(jnp.bfloat16)


def conv_pool_stage(x, w, b):
    """x: (N, Cin, H, W) f32; w: (Cout, Cin, 3, 3); b: (Cout,).
    Conv(pad=1) + bias followed by MaxPool(3, stride=2) -> (N, Cout, PH, PW)."""
    n, cin, h, w_sp = x.shape
    cout = w.shape[0]
    ph, pw = (h - 3) // 2 + 1, (w_sp - 3) // 2 + 1
    k, s = cin * 9, ph * pw

    patches = _pool_tap_patches(x, ph, pw)                # (N, 9, K, S) bf16
    w_mat = w.reshape(cout, k).astype(jnp.bfloat16)       # (Cout, K)
    b_mat = b.reshape(cout, 1).astype(jnp.float32)

    out = pl.pallas_call(
        _conv_pool_kernel,
        out_shape=jax.ShapeDtypeStruct((n, cout, s), jnp.float32),
        grid_spec=pltpu.PrefetchScalarGridSpec(
            num_scalar_prefetch=0,
            grid=(n, 9),
            in_specs=[
                pl.BlockSpec((None, None, k, s), lambda i, t: (i, t, 0, 0)),
                pl.BlockSpec((cout, k), lambda i, t: (0, 0)),
                pl.BlockSpec((cout, 1), lambda i, t: (0, 0)),
            ],
            out_specs=pl.BlockSpec((None, cout, s), lambda i, t: (i, 0, 0)),
        ),
        compiler_params=pltpu.CompilerParams(
            dimension_semantics=("parallel", "arbitrary"),
            vmem_limit_bytes=32 * 1024 * 1024,
        ),
    )(patches, w_mat, b_mat)
    return out.reshape(n, cout, ph, pw)


# ---------------------------------------------------------------------------
# Fused MLP head: Linear(4500,32) + ReLU + Linear(32,10)
# ---------------------------------------------------------------------------
def _head_kernel(x_ref, w1_ref, b1_ref, w2_ref, b2_ref, o_ref):
    h = jnp.dot(x_ref[...], w1_ref[...], preferred_element_type=jnp.float32) + b1_ref[...]
    h = jnp.maximum(h, 0.0)
    o_ref[...] = jnp.dot(h, w2_ref[...], preferred_element_type=jnp.float32) + b2_ref[...]


def mlp_head(feats, w1, b1, w2, b2):
    n = feats.shape[0]
    return pl.pallas_call(
        _head_kernel,
        out_shape=jax.ShapeDtypeStruct((n, w2.shape[1]), jnp.float32),
    )(feats, w1, b1.reshape(1, -1), w2, b2.reshape(1, -1))


# ---------------------------------------------------------------------------
# Parameters (deterministic synthetic init) and full forward pass
# ---------------------------------------------------------------------------
def init_params(key):
    ks = jax.random.split(key, 8)
    w_c1 = 0.2 * jax.random.normal(ks[0], (10, 3, 3, 3), jnp.float32)
    b_c1 = 0.05 * jax.random.normal(ks[1], (10,), jnp.float32)
    w_c2 = 0.1 * jax.random.normal(ks[2], (20, 10, 3, 3), jnp.float32)
    b_c2 = 0.05 * jax.random.normal(ks[3], (20,), jnp.float32)
    w_f1 = 0.02 * jax.random.normal(ks[4], (4500, 32), jnp.float32)   # (in, out)
    b_f1 = 0.02 * jax.random.normal(ks[5], (32,), jnp.float32)
    w_f2 = 0.05 * jax.random.normal(ks[6], (32, _NUM_CLASSES), jnp.float32)
    b_f2 = 0.02 * jax.random.normal(ks[7], (_NUM_CLASSES,), jnp.float32)
    return ((w_c1, b_c1), (w_c2, b_c2), (w_f1, b_f1), (w_f2, b_f2))


def sample_model_forward(x, params):
    (w_c1, b_c1), (w_c2, b_c2), (w_f1, b_f1), (w_f2, b_f2) = params
    x = x.astype(jnp.float32)
    x = conv_pool_stage(x, w_c1, b_c1)          # (N, 10, 31, 31)
    x = conv_pool_stage(x, w_c2, b_c2)          # (N, 20, 15, 15)
    feats = x.reshape(x.shape[0], -1)           # (N, 4500) in PyTorch (C,H,W) order
    return mlp_head(feats, w_f1, b_f1, w_f2, b_f2)


def _reference_forward(x, params):
    (w_c1, b_c1), (w_c2, b_c2), (w_f1, b_f1), (w_f2, b_f2) = params

    def conv(x, w, b):
        y = lax.conv_general_dilated(
            x, w, window_strides=(1, 1), padding=((1, 1), (1, 1)),
            dimension_numbers=("NCHW", "OIHW", "NCHW"))
        return y + b.reshape(1, -1, 1, 1)

    def pool(x):
        return lax.reduce_window(x, -jnp.inf, lax.max,
                                 (1, 1, 3, 3), (1, 1, 2, 2), "VALID")

    x = pool(conv(x, w_c1, b_c1))
    x = pool(conv(x, w_c2, b_c2))
    f = x.reshape(x.shape[0], -1)
    h = jnp.maximum(f @ w_f1 + b_f1, 0.0)
    return h @ w_f2 + b_f2


if __name__ == "__main__":
    key = jax.random.PRNGKey(0)
    k_in, k_par = jax.random.split(key)
    # input_shape=(3, 64, 64): after two conv+pool stages -> 20*15*15 = 4500 = fc1 in_features.
    x = jax.random.normal(k_in, (2, 3, 64, 64), jnp.float32)
    params = init_params(k_par)

    fwd = jax.jit(sample_model_forward)
    out = fwd(x, params)
    jax.block_until_ready(out)

    assert out.shape == (2, _NUM_CLASSES), out.shape
    assert bool(jnp.all(jnp.isfinite(out)))

    ref = _reference_forward(x, params)
    max_err = float(jnp.max(jnp.abs(out - ref)))
    assert max_err < 5e-2, f"max abs error vs reference: {max_err}"
    print("KERNEL_OK")
</pallas_src>

<mosaic_0001>
module attributes {stable_mosaic.version = 11 : i64} {
  func.func @_conv_pool_kernel(%arg0: i32, %arg1: i32, %arg2: memref<1x1x27x961xbf16, #tpu.memory_space<vmem>>, %arg3: memref<10x27xbf16, #tpu.memory_space<vmem>>, %arg4: memref<10x1xf32, #tpu.memory_space<vmem>>, %arg5: memref<1x10x961xf32, #tpu.memory_space<vmem>>) attributes {dimension_semantics = [#tpu.dimension_semantics<parallel>, #tpu.dimension_semantics<arbitrary>], iteration_bounds = array<i64: 2, 9>, scalar_prefetch = 0 : i64, scratch_operands = 0 : i64, tpu.core_type = #tpu.core_type<tc>, window_params = [{transform_indices = @transform_0, window_bounds = array<i64: 1, 1, 27, 961>}, {pipeline_mode = #tpu.pipeline_mode<synchronous>, transform_indices = @transform_1, window_bounds = array<i64: 10, 27>}, {pipeline_mode = #tpu.pipeline_mode<synchronous>, transform_indices = @transform_2, window_bounds = array<i64: 10, 1>}, {transform_indices = @transform_3, window_bounds = array<i64: 1, 10, 961>}]} {
    %c0 = arith.constant 0 : index
    %c0_0 = arith.constant 0 : index
    %0 = vector.load %arg3[%c0, %c0_0] : memref<10x27xbf16, #tpu.memory_space<vmem>>, vector<10x27xbf16>
    %c0_1 = arith.constant 0 : index
    %c0_2 = arith.constant 0 : index
    %c0_3 = arith.constant 0 : index
    %c0_4 = arith.constant 0 : index
    %1 = vector.load %arg2[%c0_1, %c0_2, %c0_3, %c0_4] : memref<1x1x27x961xbf16, #tpu.memory_space<vmem>>, vector<1x1x27x961xbf16>
    %2 = vector.shape_cast %1 : vector<1x1x27x961xbf16> to vector<27x961xbf16>
    %cst = arith.constant dense<0.000000e+00> : vector<10x961xf32>
    %3 = tpu.matmul %0, %2, %cst {dimension_numbers = #tpu.dot_dimension_numbers<[1], [0], [0], [1], [0, 0, 1, 1], [], []>} : vector<10x27xbf16>, vector<27x961xbf16>, vector<10x961xf32> -> vector<10x961xf32>
    %c0_i32 = arith.constant 0 : i32
    %4 = arith.cmpi eq, %arg1, %c0_i32 : i32
    %5 = arith.extui %4 : i1 to i32
    %c0_i32_5 = arith.constant 0 : i32
    %6 = arith.cmpi ne, %5, %c0_i32_5 : i32
    scf.if %6 {
      %c0_9 = arith.constant 0 : index
      %c0_10 = arith.constant 0 : index
      %c0_11 = arith.constant 0 : index
      %13 = vector.load %arg5[%c0_9, %c0_10, %c0_11] : memref<1x10x961xf32, #tpu.memory_space<vmem>>, vector<1x10x961xf32>
      %14 = vector.shape_cast %13 : vector<1x10x961xf32> to vector<10x961xf32>
      %15 = vector.shape_cast %3 : vector<10x961xf32> to vector<1x10x961xf32>
      tpu.vector_store %arg5[%c0_9, %c0_10, %c0_11], %15 {strides = array<i32>} : memref<1x10x961xf32, #tpu.memory_space<vmem>>, vector<1x10x961xf32>,
    } else {
    }
    %c0_i32_6 = arith.constant 0 : i32
    %7 = arith.cmpi sgt, %arg1, %c0_i32_6 : i32
    %8 = arith.extui %7 : i1 to i32
    %c0_i32_7 = arith.constant 0 : i32
    %9 = arith.cmpi ne, %8, %c0_i32_7 : i32
    scf.if %9 {
      %c0_9 = arith.constant 0 : index
      %c0_10 = arith.constant 0 : index
      %c0_11 = arith.constant 0 : index
      %13 = vector.load %arg5[%c0_9, %c0_10, %c0_11] : memref<1x10x961xf32, #tpu.memory_space<vmem>>, vector<1x10x961xf32>
      %14 = vector.shape_cast %13 : vector<1x10x961xf32> to vector<10x961xf32>
      %15 = arith.maximumf %14, %3 : vector<10x961xf32>
      %c0_12 = arith.constant 0 : index
      %c0_13 = arith.constant 0 : index
      %c0_14 = arith.constant 0 : index
      %16 = vector.load %arg5[%c0_12, %c0_13, %c0_14] : memref<1x10x961xf32, #tpu.memory_space<vmem>>, vector<1x10x961xf32>
      %17 = vector.shape_cast %16 : vector<1x10x961xf32> to vector<10x961xf32>
      %18 = vector.shape_cast %15 : vector<10x961xf32> to vector<1x10x961xf32>
      tpu.vector_store %arg5[%c0_12, %c0_13, %c0_14], %18 {strides = array<i32>} : memref<1x10x961xf32, #tpu.memory_space<vmem>>, vector<1x10x961xf32>,
    } else {
    }
    %c8_i32 = arith.constant 8 : i32
    %10 = arith.cmpi eq, %arg1, %c8_i32 : i32
    %11 = arith.extui %10 : i1 to i32
    %c0_i32_8 = arith.constant 0 : i32
    %12 = arith.cmpi ne, %11, %c0_i32_8 : i32
    scf.if %12 {
      %c0_9 = arith.constant 0 : index
      %c0_10 = arith.constant 0 : index
      %c0_11 = arith.constant 0 : index
      %13 = vector.load %arg5[%c0_9, %c0_10, %c0_11] : memref<1x10x961xf32, #tpu.memory_space<vmem>>, vector<1x10x961xf32>
      %14 = vector.shape_cast %13 : vector<1x10x961xf32> to vector<10x961xf32>
      %c0_12 = arith.constant 0 : index
      %c0_13 = arith.constant 0 : index
      %15 = vector.load %arg4[%c0_12, %c0_13] : memref<10x1xf32, #tpu.memory_space<vmem>>, vector<10x1xf32>
      %16 = vector.broadcast %15 : vector<10x1xf32> to vector<10x961xf32>
      %17 = arith.addf %14, %16 : vector<10x961xf32>
      %c0_14 = arith.constant 0 : index
      %c0_15 = arith.constant 0 : index
      %c0_16 = arith.constant 0 : index
      %18 = vector.load %arg5[%c0_14, %c0_15, %c0_16] : memref<1x10x961xf32, #tpu.memory_space<vmem>>, vector<1x10x961xf32>
      %19 = vector.shape_cast %18 : vector<1x10x961xf32> to vector<10x961xf32>
      %20 = vector.shape_cast %17 : vector<10x961xf32> to vector<1x10x961xf32>
      tpu.vector_store %arg5[%c0_14, %c0_15, %c0_16], %20 {strides = array<i32>} : memref<1x10x961xf32, #tpu.memory_space<vmem>>, vector<1x10x961xf32>,
    } else {
    }
    return
  }
  func.func @transform_0(%arg0: i32, %arg1: i32) -> (i32, i32, i32, i32) {
    %c0_i32 = arith.constant 0 : i32
    %c0_i32_0 = arith.constant 0 : i32
    %c0_i32_1 = arith.constant 0 : i32
    return %arg0, %arg1, %c0_i32, %c0_i32_0 : i32, i32, i32, i32
  }
  func.func @transform_1(%arg0: i32, %arg1: i32) -> (i32, i32) {
    %c0_i32 = arith.constant 0 : i32
    %c0_i32_0 = arith.constant 0 : i32
    %c0_i32_1 = arith.constant 0 : i32
    return %c0_i32, %c0_i32_0 : i32, i32
  }
  func.func @transform_2(%arg0: i32, %arg1: i32) -> (i32, i32) {
    %c0_i32 = arith.constant 0 : i32
    %c0_i32_0 = arith.constant 0 : i32
    %c0_i32_1 = arith.constant 0 : i32
    return %c0_i32, %c0_i32_0 : i32, i32
  }
  func.func @transform_3(%arg0: i32, %arg1: i32) -> (i32, i32, i32) {
    %c0_i32 = arith.constant 0 : i32
    %c0_i32_0 = arith.constant 0 : i32
    %c0_i32_1 = arith.constant 0 : i32
    return %arg0, %c0_i32, %c0_i32_0 : i32, i32, i32
  }
}

module attributes {stable_mosaic.version = 11 : i64} {
  func.func @_conv_pool_kernel(%arg0: i32, %arg1: i32, %arg2: memref<1x1x90x225xbf16, #tpu.memory_space<vmem>>, %arg3: memref<20x90xbf16, #tpu.memory_space<vmem>>, %arg4: memref<20x1xf32, #tpu.memory_space<vmem>>, %arg5: memref<1x20x225xf32, #tpu.memory_space<vmem>>) attributes {dimension_semantics = [#tpu.dimension_semantics<parallel>, #tpu.dimension_semantics<arbitrary>], iteration_bounds = array<i64: 2, 9>, scalar_prefetch = 0 : i64, scratch_operands = 0 : i64, tpu.core_type = #tpu.core_type<tc>, window_params = [{transform_indices = @transform_0, window_bounds = array<i64: 1, 1, 90, 225>}, {pipeline_mode = #tpu.pipeline_mode<synchronous>, transform_indices = @transform_1, window_bounds = array<i64: 20, 90>}, {pipeline_mode = #tpu.pipeline_mode<synchronous>, transform_indices = @transform_2, window_bounds = array<i64: 20, 1>}, {transform_indices = @transform_3, window_bounds = array<i64: 1, 20, 225>}]} {
    %c0 = arith.constant 0 : index
    %c0_0 = arith.constant 0 : index
    %0 = vector.load %arg3[%c0, %c0_0] : memref<20x90xbf16, #tpu.memory_space<vmem>>, vector<20x90xbf16>
    %c0_1 = arith.constant 0 : index
    %c0_2 = arith.constant 0 : index
    %c0_3 = arith.constant 0 : index
    %c0_4 = arith.constant 0 : index
    %1 = vector.load %arg2[%c0_1, %c0_2, %c0_3, %c0_4] : memref<1x1x90x225xbf16, #tpu.memory_space<vmem>>, vector<1x1x90x225xbf16>
    %2 = vector.shape_cast %1 : vector<1x1x90x225xbf16> to vector<90x225xbf16>
    %cst = arith.constant dense<0.000000e+00> : vector<20x225xf32>
    %3 = tpu.matmul %0, %2, %cst {dimension_numbers = #tpu.dot_dimension_numbers<[1], [0], [0], [1], [0, 0, 1, 1], [], []>} : vector<20x90xbf16>, vector<90x225xbf16>, vector<20x225xf32> -> vector<20x225xf32>
    %c0_i32 = arith.constant 0 : i32
    %4 = arith.cmpi eq, %arg1, %c0_i32 : i32
    %5 = arith.extui %4 : i1 to i32
    %c0_i32_5 = arith.constant 0 : i32
    %6 = arith.cmpi ne, %5, %c0_i32_5 : i32
    scf.if %6 {
      %c0_9 = arith.constant 0 : index
      %c0_10 = arith.constant 0 : index
      %c0_11 = arith.constant 0 : index
      %13 = vector.load %arg5[%c0_9, %c0_10, %c0_11] : memref<1x20x225xf32, #tpu.memory_space<vmem>>, vector<1x20x225xf32>
      %14 = vector.shape_cast %13 : vector<1x20x225xf32> to vector<20x225xf32>
      %15 = vector.shape_cast %3 : vector<20x225xf32> to vector<1x20x225xf32>
      tpu.vector_store %arg5[%c0_9, %c0_10, %c0_11], %15 {strides = array<i32>} : memref<1x20x225xf32, #tpu.memory_space<vmem>>, vector<1x20x225xf32>,
    } else {
    }
    %c0_i32_6 = arith.constant 0 : i32
    %7 = arith.cmpi sgt, %arg1, %c0_i32_6 : i32
    %8 = arith.extui %7 : i1 to i32
    %c0_i32_7 = arith.constant 0 : i32
    %9 = arith.cmpi ne, %8, %c0_i32_7 : i32
    scf.if %9 {
      %c0_9 = arith.constant 0 : index
      %c0_10 = arith.constant 0 : index
      %c0_11 = arith.constant 0 : index
      %13 = vector.load %arg5[%c0_9, %c0_10, %c0_11] : memref<1x20x225xf32, #tpu.memory_space<vmem>>, vector<1x20x225xf32>
      %14 = vector.shape_cast %13 : vector<1x20x225xf32> to vector<20x225xf32>
      %15 = arith.maximumf %14, %3 : vector<20x225xf32>
      %c0_12 = arith.constant 0 : index
      %c0_13 = arith.constant 0 : index
      %c0_14 = arith.constant 0 : index
      %16 = vector.load %arg5[%c0_12, %c0_13, %c0_14] : memref<1x20x225xf32, #tpu.memory_space<vmem>>, vector<1x20x225xf32>
      %17 = vector.shape_cast %16 : vector<1x20x225xf32> to vector<20x225xf32>
      %18 = vector.shape_cast %15 : vector<20x225xf32> to vector<1x20x225xf32>
      tpu.vector_store %arg5[%c0_12, %c0_13, %c0_14], %18 {strides = array<i32>} : memref<1x20x225xf32, #tpu.memory_space<vmem>>, vector<1x20x225xf32>,
    } else {
    }
    %c8_i32 = arith.constant 8 : i32
    %10 = arith.cmpi eq, %arg1, %c8_i32 : i32
    %11 = arith.extui %10 : i1 to i32
    %c0_i32_8 = arith.constant 0 : i32
    %12 = arith.cmpi ne, %11, %c0_i32_8 : i32
    scf.if %12 {
      %c0_9 = arith.constant 0 : index
      %c0_10 = arith.constant 0 : index
      %c0_11 = arith.constant 0 : index
      %13 = vector.load %arg5[%c0_9, %c0_10, %c0_11] : memref<1x20x225xf32, #tpu.memory_space<vmem>>, vector<1x20x225xf32>
      %14 = vector.shape_cast %13 : vector<1x20x225xf32> to vector<20x225xf32>
      %c0_12 = arith.constant 0 : index
      %c0_13 = arith.constant 0 : index
      %15 = vector.load %arg4[%c0_12, %c0_13] : memref<20x1xf32, #tpu.memory_space<vmem>>, vector<20x1xf32>
      %16 = vector.broadcast %15 : vector<20x1xf32> to vector<20x225xf32>
      %17 = arith.addf %14, %16 : vector<20x225xf32>
      %c0_14 = arith.constant 0 : index
      %c0_15 = arith.constant 0 : index
      %c0_16 = arith.constant 0 : index
      %18 = vector.load %arg5[%c0_14, %c0_15, %c0_16] : memref<1x20x225xf32, #tpu.memory_space<vmem>>, vector<1x20x225xf32>
      %19 = vector.shape_cast %18 : vector<1x20x225xf32> to vector<20x225xf32>
      %20 = vector.shape_cast %17 : vector<20x225xf32> to vector<1x20x225xf32>
      tpu.vector_store %arg5[%c0_14, %c0_15, %c0_16], %20 {strides = array<i32>} : memref<1x20x225xf32, #tpu.memory_space<vmem>>, vector<1x20x225xf32>,
    } else {
    }
    return
  }
  func.func @transform_0(%arg0: i32, %arg1: i32) -> (i32, i32, i32, i32) {
    %c0_i32 = arith.constant 0 : i32
    %c0_i32_0 = arith.constant 0 : i32
    %c0_i32_1 = arith.constant 0 : i32
    return %arg0, %arg1, %c0_i32, %c0_i32_0 : i32, i32, i32, i32
  }
  func.func @transform_1(%arg0: i32, %arg1: i32) -> (i32, i32) {
    %c0_i32 = arith.constant 0 : i32
    %c0_i32_0 = arith.constant 0 : i32
    %c0_i32_1 = arith.constant 0 : i32
    return %c0_i32, %c0_i32_0 : i32, i32
  }
  func.func @transform_2(%arg0: i32, %arg1: i32) -> (i32, i32) {
    %c0_i32 = arith.constant 0 : i32
    %c0_i32_0 = arith.constant 0 : i32
    %c0_i32_1 = arith.constant 0 : i32
    return %c0_i32, %c0_i32_0 : i32, i32
  }
  func.func @transform_3(%arg0: i32, %arg1: i32) -> (i32, i32, i32) {
    %c0_i32 = arith.constant 0 : i32
    %c0_i32_0 = arith.constant 0 : i32
    %c0_i32_1 = arith.constant 0 : i32
    return %arg0, %c0_i32, %c0_i32_0 : i32, i32, i32
  }
}

module attributes {stable_mosaic.version = 11 : i64} {
  func.func @_head_kernel(%arg0: memref<2x4500xf32, #tpu.memory_space<vmem>>, %arg1: memref<4500x32xf32, #tpu.memory_space<vmem>>, %arg2: memref<1x32xf32, #tpu.memory_space<vmem>>, %arg3: memref<32x10xf32, #tpu.memory_space<vmem>>, %arg4: memref<1x10xf32, #tpu.memory_space<vmem>>, %arg5: memref<2x10xf32, #tpu.memory_space<vmem>>) attributes {dimension_semantics = [], scalar_prefetch = 0 : i64, scratch_operands = 0 : i64, tpu.core_type = #tpu.core_type<tc>} {
    %c0 = arith.constant 0 : index
    %c0_0 = arith.constant 0 : index
    %0 = vector.load %arg0[%c0, %c0_0] : memref<2x4500xf32, #tpu.memory_space<vmem>>, vector<2x4500xf32>
    %c0_1 = arith.constant 0 : index
    %c0_2 = arith.constant 0 : index
    %1 = vector.load %arg1[%c0_1, %c0_2] : memref<4500x32xf32, #tpu.memory_space<vmem>>, vector<4500x32xf32>
    %cst = arith.constant dense<0.000000e+00> : vector<2x32xf32>
    %2 = tpu.matmul %0, %1, %cst {dimension_numbers = #tpu.dot_dimension_numbers<[1], [0], [0], [1], [0, 0, 1, 1], [], []>} : vector<2x4500xf32>, vector<4500x32xf32>, vector<2x32xf32> -> vector<2x32xf32>
    %c0_3 = arith.constant 0 : index
    %c0_4 = arith.constant 0 : index
    %3 = vector.load %arg2[%c0_3, %c0_4] : memref<1x32xf32, #tpu.memory_space<vmem>>, vector<1x32xf32>
    %4 = vector.broadcast %3 : vector<1x32xf32> to vector<2x32xf32>
    %5 = arith.addf %2, %4 : vector<2x32xf32>
    %cst_5 = arith.constant 0.000000e+00 : f32
    %6 = vector.broadcast %cst_5 : f32 to vector<2x32xf32>
    %7 = arith.maximumf %5, %6 : vector<2x32xf32>
    %c0_6 = arith.constant 0 : index
    %c0_7 = arith.constant 0 : index
    %8 = vector.load %arg3[%c0_6, %c0_7] : memref<32x10xf32, #tpu.memory_space<vmem>>, vector<32x10xf32>
    %cst_8 = arith.constant dense<0.000000e+00> : vector<2x10xf32>
    %9 = tpu.matmul %7, %8, %cst_8 {dimension_numbers = #tpu.dot_dimension_numbers<[1], [0], [0], [1], [0, 0, 1, 1], [], []>} : vector<2x32xf32>, vector<32x10xf32>, vector<2x10xf32> -> vector<2x10xf32>
    %c0_9 = arith.constant 0 : index
    %c0_10 = arith.constant 0 : index
    %10 = vector.load %arg4[%c0_9, %c0_10] : memref<1x10xf32, #tpu.memory_space<vmem>>, vector<1x10xf32>
    %11 = vector.broadcast %10 : vector<1x10xf32> to vector<2x10xf32>
    %12 = arith.addf %9, %11 : vector<2x10xf32>
    %c0_11 = arith.constant 0 : index
    %c0_12 = arith.constant 0 : index
    %13 = vector.load %arg5[%c0_11, %c0_12] : memref<2x10xf32, #tpu.memory_space<vmem>>, vector<2x10xf32>
    tpu.vector_store %arg5[%c0_11, %c0_12], %12 {strides = array<i32>} : memref<2x10xf32, #tpu.memory_space<vmem>>, vector<2x10xf32>,
    return
  }
}

</mosaic_0001>

<llo_original>
// kernel: sample_model_forward.3
$region0: #{sample_model_forward.3}
  #allocation0 [shape = 'u32[]', space=smem, size = 0x4, offset = 0x4, fixed_abs, tag = 'smem constant byte address 0x4 - core index']
  #allocation1 [shape = 'u32[72,128]{1,0:T(1,128)}', space=vmem, size = 0x9000, scoped, tag = 'internal scratch']
  %s0 = inlined_call_operand.vmem [shape: bf16[2,9,27,961], index: 0, kind: input, shape index: {}]
  %s1 = inlined_call_operand.vmem [shape: bf16[10,27], index: 1, kind: input, shape index: {}]
  %s2 = inlined_call_operand.vmem [shape: f32[10,1], index: 2, kind: input, shape index: {}]
  %s3 = inlined_call_operand.vmem [shape: f32[2,10,961], index: 3, kind: output, shape index: {}]
  %s4 = sld [smem:[#allocation0]]
  $region57: #{sample_model_forward.3} parent=0
    _
  %s6 = ssub.s32 1, %s4
  %s7 = scalar_select 0, %s6, %s4
  loop: start=0, step=1, limit=20
  $region2: #{sample_model_forward.3} parent=0 // loop_pre_header
    _
  $region3: #{sample_model_forward.3} parent=0 // loop_header
    %s9 = sphi 0, %s13
    %p10 = scmp.ge.s32.totalorder %s9, 20
    %s16 = sphi 0, %s28
    %s17 = sphi 0, %s24
    %s18 = sphi 0, %s16
    %s19 = sphi 0, %s17
    %s20 = sphi 0, %s18
    %s21 = sphi 0, %s19
    %s33 = sphi 0, %s35
    %s36 = sphi 0, %s33
    %s37 = sphi 0, %s36
    %s53 = sphi 0, %s37
    %s57 = sphi 0, %s57
    %s59 = sphi 0, %s57
    %s60 = sphi 0, %s59
    %s74 = sphi 0, %s60
    %s78 = sphi 0, %s78
    %s80 = sphi 0, %s78
    %s81 = sphi 0, %s80
    %s95 = sphi 0, %s81
    %s101 = sphi 0, %s103
    %s104 = sphi 0, %s101
    %s105 = sphi 0, %s104
    %s121 = sphi 0, %s105
  $region4: #{sample_model_forward.3} parent=0 // loop_header_branch
    %12 = sbr.rel (%p10) target = $region8
  $region5: #{sample_model_forward.3} parent=0 // loop_body
    %s14 = ssub.s32 %s9, 1
    %s15 = ssub.s32 %s9, 2
    %s22 = sadd.s32 1, %s17
    %p23 = scmp.ge.s32.totalorder %s22, 9
    %s24 = scalar_select %p23, 0, %s22
    %s25 = sadd.s32 1, %s16
    %s26 = scalar_select %p23, %s25, %s16
    %p27 = scmp.ge.s32.totalorder %s26, 2
    %s28 = scalar_select %p27, 0, %s26
    %s29 = ssub.s32 %s16, %s28
    %s30 = ssub.s32 %s17, %s24
    %s31 = sor.u32 %s29, %s30
    %p32 = scmp.eq.s32.totalorder %s31, 0
    %s34 = sadd.s32 %s33, 1
    %s35 = scalar_select %p32, %s33, %s34
    %p38 = pneg %p32
    %p39 = scmp.eq.s32.totalorder %s9, 17
    %p40 = por %p38, %p39
    %p41 = scmp.ne.s32.totalorder %s33, %s36
    %p42 = scmp.eq.s32.totalorder %s9, 0
    %p43 = por %p41, %p42
    %p44 = scmp.ne.s32.totalorder %s33, %s36
    %p45 = scmp.eq.s32.totalorder %s14, 17
    %p46 = por %p44, %p45
    %p47 = scmp.ne.s32.totalorder %s36, %s37
    %p48 = scmp.eq.s32.totalorder %s14, 0
    %p49 = por %p47, %p48
    %p50 = scmp.ne.s32.totalorder %s36, %s37
    %p51 = scmp.eq.s32.totalorder %s15, 17
    %p52 = por %p50, %p51
    %p54 = scmp.ne.s32.totalorder %s37, %s53
    %p55 = scmp.eq.s32.totalorder %s15, 0
    %p56 = por %p54, %p55
    %s58 = sadd.s32 %s57, 1
    %p61 = scmp.eq.s32.totalorder %s9, 17
    %p62 = scmp.ne.s32.totalorder %s57, %s59
    %p63 = scmp.eq.s32.totalorder %s9, 0
    %p64 = por %p62, %p63
    %p65 = scmp.ne.s32.totalorder %s57, %s59
    %p66 = scmp.eq.s32.totalorder %s14, 17
    %p67 = por %p65, %p66
    %p68 = scmp.ne.s32.totalorder %s59, %s60
    %p69 = scmp.eq.s32.totalorder %s14, 0
    %p70 = por %p68, %p69
    %p71 = scmp.ne.s32.totalorder %s59, %s60
    %p72 = scmp.eq.s32.totalorder %s15, 17
    %p73 = por %p71, %p72
    %p75 = scmp.ne.s32.totalorder %s60, %s74
    %p76 = scmp.eq.s32.totalorder %s15, 0
    %p77 = por %p75, %p76
    %s79 = sadd.s32 %s78, 1
    %p82 = scmp.eq.s32.totalorder %s9, 17
    %p83 = scmp.ne.s32.totalorder %s78, %s80
    %p84 = scmp.eq.s32.totalorder %s9, 0
    %p85 = por %p83, %p84
    %p86 = scmp.ne.s32.totalorder %s78, %s80
    %p87 = scmp.eq.s32.totalorder %s14, 17
    %p88 = por %p86, %p87
    %p89 = scmp.ne.s32.totalorder %s80, %s81
    %p90 = scmp.eq.s32.totalorder %s14, 0
    %p91 = por %p89, %p90
    %p92 = scmp.ne.s32.totalorder %s80, %s81
    %p93 = scmp.eq.s32.totalorder %s15, 17
    %p94 = por %p92, %p93
    %p96 = scmp.ne.s32.totalorder %s81, %s95
    %p97 = scmp.eq.s32.totalorder %s15, 0
    %p98 = por %p96, %p97
    %s99 = ssub.s32 %s16, %s28
    %p100 = scmp.eq.s32.totalorder %s99, 0
    %s102 = sadd.s32 %s101, 1
    %s103 = scalar_select %p100, %s101, %s102
    %p106 = pneg %p100
    %p107 = scmp.eq.s32.totalorder %s9, 17
    %p108 = por %p106, %p107
    %p109 = scmp.ne.s32.totalorder %s101, %s104
    %p110 = scmp.eq.s32.totalorder %s9, 0
    %p111 = por %p109, %p110
    %p112 = scmp.ne.s32.totalorder %s101, %s104
    %p113 = scmp.eq.s32.totalorder %s14, 17
    %p114 = por %p112, %p113
    %p115 = scmp.ne.s32.totalorder %s104, %s105
    %p116 = scmp.eq.s32.totalorder %s14, 0
    %p117 = por %p115, %p116
    %p118 = scmp.ne.s32.totalorder %s104, %s105
    %p119 = scmp.eq.s32.totalorder %s15, 17
    %p120 = por %p118, %p119
    %p122 = scmp.ne.s32.totalorder %s105, %s121
    %p123 = scmp.eq.s32.totalorder %s15, 0
    %p124 = por %p122, %p123
    %p125 = scmp.le.s32.totalorder 1, %s9
    %p126 = scmp.lt.s32.totalorder %s9, 19
    %p127 = pnand %p125, %p126
    %p128 = pneg %p127
    // Predicated region
    $region9: #{sample_model_forward.3} parent=5 // pred_check
      _
    $region10: #{sample_model_forward.3} parent=5 // pred_check_branch
      %130 = sbr.rel (%p127) target = $region12
    $region11: #{sample_model_forward.3} parent=5 // pred_region
      %s131 = ssub.s32 %s9, 1
      // Predicated region
      $region13: #{sample_model_forward.3} parent=11 // pred_check
        %p132 = pneg %p70
      $region14: #{sample_model_forward.3} parent=11 // pred_check_branch
        %134 = sbr.rel (%p132) target = $region16
      $region15: #{sample_model_forward.3} parent=11 // pred_region
        _
      $region16: #{sample_model_forward.3} parent=11 // pred_fallthru
        _
      // Predicated region
      $region17: #{sample_model_forward.3} parent=11 // pred_check
        %p135 = pneg %p91
      $region18: #{sample_model_forward.3} parent=11 // pred_check_branch
        %137 = sbr.rel (%p135) target = $region20
      $region19: #{sample_model_forward.3} parent=11 // pred_region
        _
      $region20: #{sample_model_forward.3} parent=11 // pred_fallthru
        _
    $region12: #{sample_model_forward.3} parent=5 // pred_fallthru
      _
    %p138 = scmp.lt.s32.totalorder %s9, 18
    // Predicated region
    $region21: #{sample_model_forward.3} parent=5 // pred_check
      %p139 = pneg %p138
    $region22: #{sample_model_forward.3} parent=5 // pred_check_branch
      %141 = sbr.rel (%p139) target = $region24
    $region23: #{sample_model_forward.3} parent=5 // pred_region
      // Predicated region
      $region25: #{sample_model_forward.3} parent=23 // pred_check
        %p142 = pneg %p43
      $region26: #{sample_model_forward.3} parent=23 // pred_check_branch
        %144 = sbr.rel (%p142) target = $region28
      $region27: #{sample_model_forward.3} parent=23 // pred_region
        %p145 = scmp.lt.s32.totalorder %s16, 1
        %s146 = scalar_select %p145, %s16, 1
        %p147 = scmp.lt.s32.totalorder %s17, 8
        %s148 = scalar_select %p147, %s17, 8
        %s149 = smul.addr %s148, 32
        %s150 = smul.addr %s146, 288
        %s151 = sadd.s32 %s149, %s150
        %s152 = smul.addr %s151, 4
        %s153 = scalar_lea.vmem %s0, %s152
      $region28: #{sample_model_forward.3} parent=23 // pred_fallthru
        _
    $region24: #{sample_model_forward.3} parent=5 // pred_fallthru
      _
    %p154 = scmp.le.s32.totalorder 1, %s9
    %p155 = scmp.lt.s32.totalorder %s9, 19
    %p156 = pnand %p154, %p155
    %p157 = pneg %p156
    // Predicated region
    $region29: #{sample_model_forward.3} parent=5 // pred_check
      _
    $region30: #{sample_model_forward.3} parent=5 // pred_check_branch
      %159 = sbr.rel (%p156) target = $region32
    $region31: #{sample_model_forward.3} parent=5 // pred_region
      %s160 = ssub.s32 %s9, 1
      %p161 = scmp.lt.s32.totalorder %s18, 1
      %s162 = scalar_select %p161, %s18, 1
      %p163 = scmp.lt.s32.totalorder %s19, 8
      %s164 = scalar_select %p163, %s19, 8
      %s165 = smul.addr %s164, 32
      %s166 = smul.addr %s162, 288
      %s167 = sadd.s32 %s165, %s166
      %s168 = smul.addr %s167, 4
      %s169 = scalar_lea.vmem %s0, %s168
      %p170 = pneg %p49
      %p171 = pneg %p46
      %p172 = pneg %p70
      %p173 = pneg %p67
      %p174 = pneg %p91
      %p175 = pneg %p88
      %p176 = pneg %p117
      %p177 = pneg %p114
      %p178 = scmp.lt.s32.totalorder %s18, 1
      %s179 = scalar_select %p178, %s18, 1
      %s180 = smul.addr %s179, 16
      %s181 = smul.addr %s180, 8
      %s182 = scalar_lea.vmem %s3, %s181
      %p183 = scmp.lt.s32.totalorder %s18, 1
      %s184 = scalar_select %p183, %s18, 1
      %p185 = scmp.lt.s32.totalorder %s19, 8
      %s186 = scalar_select %p185, %s19, 8
      %s187 = smul.addr %s186, 32
      %s188 = smul.addr %s184, 288
      %s189 = sadd.s32 %s187, %s188
      %s190 = smul.addr %s189, 4
      %s191 = scalar_lea.vmem %s0, %s190
      %p192 = scmp.lt.s32.totalorder %s18, 1
      %s193 = scalar_select %p192, %s18, 1
      %s194 = smul.addr %s193, 16
      %s195 = smul.addr %s194, 8
      %s196 = scalar_lea.vmem %s3, %s195
      %v198 = vld [vmem:[%s1] sm:$0xf]
      %v199 = vld [vmem:[%s1 + $0x4] sm:$0x1]
      %v200 = vld [vmem:[%s191] sm:$0xff]
      %v201 = vld [vmem:[%s191 + $0x8] sm:$0xff]
      %v202 = vld [vmem:[%s191 + $0x10] sm:$0xff]
      %v203 = vld [vmem:[%s191 + $0x18] sm:$0xff]
      %v204 = vld [vmem:[%s191 + $0x20] sm:$0xff]
      %v205 = vld [vmem:[%s191 + $0x28] sm:$0xff]
      %v206 = vld [vmem:[%s191 + $0x30] sm:$0xff]
      %v207 = vld [vmem:[%s191 + $0x38] sm:$0xff]
      %v208 = vld [vmem:[%s191 + $0x40] sm:$0xff]
      %v209 = vld [vmem:[%s191 + $0x48] sm:$0xff]
      %v210 = vld [vmem:[%s191 + $0x50] sm:$0xff]
      %v211 = vld [vmem:[%s191 + $0x58] sm:$0xff]
      %v212 = vld [vmem:[%s191 + $0x60] sm:$0x33]
      %v213 = vld [vmem:[%s191 + $0x68] sm:$0x33]
      %v214 = vld [vmem:[%s191 + $0x70] sm:$0x33]
      %v215 = vld [vmem:[%s191 + $0x78] sm:$0x33]
      %v218 = vunpack.c.l.b16 %v198
      %v219 = vunpack.c.l.b16 %v199
      %v220 = vpack.c.b16 %v219, %v218
      %v237 = vunpack.c.l.b16 %v200
      %v238 = vunpack.c.h.b16 %v200
      %v239 = vunpack.c.l.b16 %v201
      %v240 = vunpack.c.h.b16 %v201
      %v241 = vunpack.c.l.b16 %v202
      %v242 = vunpack.c.h.b16 %v202
      %v243 = vunpack.c.l.b16 %v203
      %v244 = vunpack.c.h.b16 %v203
      %v245 = vunpack.c.l.b16 %v204
      %v246 = vunpack.c.h.b16 %v204
      %v247 = vunpack.c.l.b16 %v205
      %v248 = vunpack.c.h.b16 %v205
      %v249 = vunpack.c.l.b16 %v206
      %v250 = vunpack.c.h.b16 %v206
      %v251 = vunpack.c.l.b16 %v207
      %v252 = vunpack.c.h.b16 %v207
      %v253 = vunpack.c.l.b16 %v208
      %v254 = vunpack.c.h.b16 %v208
      %v255 = vunpack.c.l.b16 %v209
      %v256 = vunpack.c.h.b16 %v209
      %v257 = vunpack.c.l.b16 %v210
      %v258 = vunpack.c.h.b16 %v210
      %v259 = vunpack.c.l.b16 %v211
      %v260 = vunpack.c.h.b16 %v211
      %v261 = vunpack.c.l.b16 %v212
      %v262 = vunpack.c.h.b16 %v212
      %v263 = vunpack.c.l.b16 %v213
      %v264 = vunpack.c.h.b16 %v213
      %v265 = vunpack.c.l.b16 %v214
      %v266 = vunpack.c.h.b16 %v214
      %v267 = vunpack.c.l.b16 %v215
      %v268 = vunpack.c.h.b16 %v215
      %v269 = vpack.c.b16 %v245, %v237
      %v270 = vpack.c.b16 %v246, %v238
      %v271 = vpack.c.b16 %v247, %v239
      %v272 = vpack.c.b16 %v248, %v240
      %v273 = vpack.c.b16 %v249, %v241
      %v274 = vpack.c.b16 %v250, %v242
      %v275 = vpack.c.b16 %v251, %v243
      %v276 = vpack.c.b16 %v252, %v244
      %v277 = vpack.c.b16 %v261, %v253
      %v278 = vpack.c.b16 %v262, %v254
      %v279 = vpack.c.b16 %v263, %v255
      %v280 = vpack.c.b16 %v264, %v256
      %v281 = vpack.c.b16 %v265, %v257
      %v282 = vpack.c.b16 %v266, %v258
      %v283 = vpack.c.b16 %v267, %v259
      %v284 = vpack.c.b16 %v268, %v260
      %vm293 = vcmask 220160
      %v295 = vsel %vm293, %v220, 0
      %vm297 = vcmask 1044480
      %vm298 = vcmask 1045504
      %v299 = vsel %vm297, 4294967295, 65535
      %v300 = vsel %vm298, %v299, 0
      %v302 = vand.u32 %v277, %v300
      %v305 = vand.u32 %v278, %v300
      %v308 = vand.u32 %v279, %v300
      %v311 = vand.u32 %v280, %v300
      %v314 = vand.u32 %v281, %v300
      %v317 = vand.u32 %v282, %v300
      %v320 = vand.u32 %v283, %v300
      %v323 = vand.u32 %v284, %v300
      %325 = vmatpush.bf16.msra.mxu0 0
      %326 = vmatpush.bf16.msra.mxu0 0
      %327 = vmatpush.bf16.msra.mxu0 0
      %328 = vmatpush.bf16.msra.mxu0 0
      %329 = vmatpush.bf16.msra.mxu0 0
      %330 = vmatpush.bf16.msra.mxu0 0
      %331 = vmatpush.bf16.msra.mxu0 %v302
      %332 = vmatpush.bf16.msra.mxu0 %v269
      %333 = vmatmul.bf16.gmra.mxu0 %v295
      %v334 = vpop.f32.mrf.mxu0
      %v335 = vadd.f32 0.0, %v334
      %v336 = vpop.f32.mrf.mxu0
      %v337 = vadd.f32 0.0, %v336
      %338 = vdwg.mxu0
      %339 = vmatpush.bf16.msra.mxu0 0
      %340 = vmatpush.bf16.msra.mxu0 0
      %341 = vmatpush.bf16.msra.mxu0 0
      %342 = vmatpush.bf16.msra.mxu0 0
      %343 = vmatpush.bf16.msra.mxu0 0
      %344 = vmatpush.bf16.msra.mxu0 0
      %345 = vmatpush.bf16.msra.mxu0 %v305
      %346 = vmatpush.bf16.msra.mxu0 %v270
      %347 = vmatmul.bf16.gmra.mxu0 %v295
      %v348 = vpop.f32.mrf.mxu0
      %v349 = vadd.f32 0.0, %v348
      %v350 = vpop.f32.mrf.mxu0
      %v351 = vadd.f32 0.0, %v350
      %352 = vdwg.mxu0
      %353 = vmatpush.bf16.msra.mxu0 0
      %354 = vmatpush.bf16.msra.mxu0 0
      %355 = vmatpush.bf16.msra.mxu0 0
      %356 = vmatpush.bf16.msra.mxu0 0
      %357 = vmatpush.bf16.msra.mxu0 0
      %358 = vmatpush.bf16.msra.mxu0 0
      %359 = vmatpush.bf16.msra.mxu0 %v308
      %360 = vmatpush.bf16.msra.mxu0 %v271
      %361 = vmatmul.bf16.gmra.mxu0 %v295
      %v362 = vpop.f32.mrf.mxu0
      %v363 = vadd.f32 0.0, %v362
      %v364 = vpop.f32.mrf.mxu0
      %v365 = vadd.f32 0.0, %v364
      %366 = vdwg.mxu0
      %367 = vmatpush.bf16.msra.mxu0 0
      %368 = vmatpush.bf16.msra.mxu0 0
      %369 = vmatpush.bf16.msra.mxu0 0
      %370 = vmatpush.bf16.msra.mxu0 0
      %371 = vmatpush.bf16.msra.mxu0 0
      %372 = vmatpush.bf16.msra.mxu0 0
      %373 = vmatpush.bf16.msra.mxu0 %v311
      %374 = vmatpush.bf16.msra.mxu0 %v272
      %375 = vmatmul.bf16.gmra.mxu0 %v295
      %v376 = vpop.f32.mrf.mxu0
      %v377 = vadd.f32 0.0, %v376
      %v378 = vpop.f32.mrf.mxu0
      %v379 = vadd.f32 0.0, %v378
      %380 = vdwg.mxu0
      %381 = vmatpush.bf16.msra.mxu0 0
      %382 = vmatpush.bf16.msra.mxu0 0
      %383 = vmatpush.bf16.msra.mxu0 0
      %384 = vmatpush.bf16.msra.mxu0 0
      %385 = vmatpush.bf16.msra.mxu0 0
      %386 = vmatpush.bf16.msra.mxu0 0
      %387 = vmatpush.bf16.msra.mxu0 %v314
      %388 = vmatpush.bf16.msra.mxu0 %v273
      %389 = vmatmul.bf16.gmra.mxu0 %v295
      %v390 = vpop.f32.mrf.mxu0
      %v391 = vadd.f32 0.0, %v390
      %v392 = vpop.f32.mrf.mxu0
      %v393 = vadd.f32 0.0, %v392
      %394 = vdwg.mxu0
      %395 = vmatpush.bf16.msra.mxu0 0
      %396 = vmatpush.bf16.msra.mxu0 0
      %397 = vmatpush.bf16.msra.mxu0 0
      %398 = vmatpush.bf16.msra.mxu0 0
      %399 = vmatpush.bf16.msra.mxu0 0
      %400 = vmatpush.bf16.msra.mxu0 0
      %401 = vmatpush.bf16.msra.mxu0 %v317
      %402 = vmatpush.bf16.msra.mxu0 %v274
      %403 = vmatmul.bf16.gmra.mxu0 %v295
      %v404 = vpop.f32.mrf.mxu0
      %v405 = vadd.f32 0.0, %v404
      %v406 = vpop.f32.mrf.mxu0
      %v407 = vadd.f32 0.0, %v406
      %408 = vdwg.mxu0
      %409 = vmatpush.bf16.msra.mxu0 0
      %410 = vmatpush.bf16.msra.mxu0 0
      %411 = vmatpush.bf16.msra.mxu0 0
      %412 = vmatpush.bf16.msra.mxu0 0
      %413 = vmatpush.bf16.msra.mxu0 0
      %414 = vmatpush.bf16.msra.mxu0 0
      %415 = vmatpush.bf16.msra.mxu0 %v320
      %416 = vmatpush.bf16.msra.mxu0 %v275
      %417 = vmatmul.bf16.gmra.mxu0 %v295
      %v418 = vpop.f32.mrf.mxu0
      %v419 = vadd.f32 0.0, %v418
      %v420 = vpop.f32.mrf.mxu0
      %v421 = vadd.f32 0.0, %v420
      %422 = vdwg.mxu0
      %423 = vmatpush.bf16.msra.mxu0 0
      %424 = vmatpush.bf16.msra.mxu0 0
      %425 = vmatpush.bf16.msra.mxu0 0
      %426 = vmatpush.bf16.msra.mxu0 0
      %427 = vmatpush.bf16.msra.mxu0 0
      %428 = vmatpush.bf16.msra.mxu0 0
      %429 = vmatpush.bf16.msra.mxu0 %v323
      %430 = vmatpush.bf16.msra.mxu0 %v276
      %431 = vmatmul.bf16.gmra.mxu0 %v295
      %v432 = vpop.f32.mrf.mxu0
      %v433 = vadd.f32 0.0, %v432
      %v434 = vpop.f32.mrf.mxu0
      %v435 = vadd.f32 0.0, %v434
      %436 = vdwg.mxu0
      %p437 = scmp.eq.s32.totalorder %s19, 0
      // Predicated region
      $region33: #{sample_model_forward.3} parent=31 // pred_check
        %p438 = pneg %p437
      $region34: #{sample_model_forward.3} parent=31 // pred_check_branch
        %440 = sbr.rel (%p438) target = $region36
      $region35: #{sample_model_forward.3} parent=31 // pred_region
        %441 = vst [vmem:[%s196] sm:$0xff] %v335
        %442 = vst [vmem:[%s196 + $0x8] sm:$0xff] %v349
        %443 = vst [vmem:[%s196 + $0x10] sm:$0xff] %v363
        %444 = vst [vmem:[%s196 + $0x18] sm:$0xff] %v377
        %445 = vst [vmem:[%s196 + $0x20] sm:$0xff] %v391
        %446 = vst [vmem:[%s196 + $0x28] sm:$0xff] %v405
        %447 = vst [vmem:[%s196 + $0x30] sm:$0xff] %v419
        %vm448 = vcmask 531456
        %449 = vst.msk [vmem:[%s196 + $0x38] sm:$0xff] %vm448, %v433
        %450 = vst [vmem:[%s196 + $0x40] sm:$0x3] %v337
        %451 = vst [vmem:[%s196 + $0x48] sm:$0x3] %v351
        %452 = vst [vmem:[%s196 + $0x50] sm:$0x3] %v365
        %453 = vst [vmem:[%s196 + $0x58] sm:$0x3] %v379
        %454 = vst [vmem:[%s196 + $0x60] sm:$0x3] %v393
        %455 = vst [vmem:[%s196 + $0x68] sm:$0x3] %v407
        %456 = vst [vmem:[%s196 + $0x70] sm:$0x3] %v421
        %vm457 = vcmask 525312
        %458 = vst.msk [vmem:[%s196 + $0x78] sm:$0x3] %vm457, %v435
      $region36: #{sample_model_forward.3} parent=31 // pred_fallthru
        _
      %p459 = scmp.gt.s32.totalorder %s19, 0
      // Predicated region
      $region37: #{sample_model_forward.3} parent=31 // pred_check
        %p460 = pneg %p459
      $region38: #{sample_model_forward.3} parent=31 // pred_check_branch
        %462 = sbr.rel (%p460) target = $region40
      $region39: #{sample_model_forward.3} parent=31 // pred_region
        %v463 = vld [vmem:[%s196] sm:$0xff]
        %v464 = vld [vmem:[%s196 + $0x8] sm:$0xff]
        %v465 = vld [vmem:[%s196 + $0x10] sm:$0xff]
        %v466 = vld [vmem:[%s196 + $0x18] sm:$0xff]
        %v467 = vld [vmem:[%s196 + $0x20] sm:$0xff]
        %v468 = vld [vmem:[%s196 + $0x28] sm:$0xff]
        %v469 = vld [vmem:[%s196 + $0x30] sm:$0xff]
        %v470 = vld [vmem:[%s196 + $0x38] sm:$0xff]
        %v471 = vld [vmem:[%s196 + $0x40] sm:$0x3]
        %v472 = vld [vmem:[%s196 + $0x48] sm:$0x3]
        %v473 = vld [vmem:[%s196 + $0x50] sm:$0x3]
        %v474 = vld [vmem:[%s196 + $0x58] sm:$0x3]
        %v475 = vld [vmem:[%s196 + $0x60] sm:$0x3]
        %v476 = vld [vmem:[%s196 + $0x68] sm:$0x3]
        %v477 = vld [vmem:[%s196 + $0x70] sm:$0x3]
        %v478 = vld [vmem:[%s196 + $0x78] sm:$0x3]
        %v479 = vmax.f32 %v463, %v335
        %v480 = vmax.f32 %v464, %v349
        %v481 = vmax.f32 %v465, %v363
        %v482 = vmax.f32 %v466, %v377
        %v483 = vmax.f32 %v467, %v391
        %v484 = vmax.f32 %v468, %v405
        %v485 = vmax.f32 %v469, %v419
        %v486 = vmax.f32 %v470, %v433
        %v487 = vmax.f32 %v471, %v337
        %v488 = vmax.f32 %v472, %v351
        %v489 = vmax.f32 %v473, %v365
        %v490 = vmax.f32 %v474, %v379
        %v491 = vmax.f32 %v475, %v393
        %v492 = vmax.f32 %v476, %v407
        %v493 = vmax.f32 %v477, %v421
        %v494 = vmax.f32 %v478, %v435
        %495 = vst [vmem:[%s196] sm:$0xff] %v479
        %496 = vst [vmem:[%s196 + $0x8] sm:$0xff] %v480
        %497 = vst [vmem:[%s196 + $0x10] sm:$0xff] %v481
        %498 = vst [vmem:[%s196 + $0x18] sm:$0xff] %v482
        %499 = vst [vmem:[%s196 + $0x20] sm:$0xff] %v483
        %500 = vst [vmem:[%s196 + $0x28] sm:$0xff] %v484
        %501 = vst [vmem:[%s196 + $0x30] sm:$0xff] %v485
        %vm502 = vcmask 531456
        %503 = vst.msk [vmem:[%s196 + $0x38] sm:$0xff] %vm502, %v486
        %504 = vst [vmem:[%s196 + $0x40] sm:$0x3] %v487
        %505 = vst [vmem:[%s196 + $0x48] sm:$0x3] %v488
        %506 = vst [vmem:[%s196 + $0x50] sm:$0x3] %v489
        %507 = vst [vmem:[%s196 + $0x58] sm:$0x3] %v490
        %508 = vst [vmem:[%s196 + $0x60] sm:$0x3] %v491
        %509 = vst [vmem:[%s196 + $0x68] sm:$0x3] %v492
        %510 = vst [vmem:[%s196 + $0x70] sm:$0x3] %v493
        %vm511 = vcmask 525312
        %512 = vst.msk [vmem:[%s196 + $0x78] sm:$0x3] %vm511, %v494
      $region40: #{sample_model_forward.3} parent=31 // pred_fallthru
        _
      %p513 = scmp.eq.s32.totalorder %s19, 8
      // Predicated region
      $region41: #{sample_model_forward.3} parent=31 // pred_check
        %p514 = pneg %p513
      $region42: #{sample_model_forward.3} parent=31 // pred_check_branch
        %516 = sbr.rel (%p514) target = $region44
      $region43: #{sample_model_forward.3} parent=31 // pred_region
        %v517 = vld [vmem:[%s196] sm:$0xff]
        %v518 = vld [vmem:[%s196 + $0x8] sm:$0xff]
        %v519 = vld [vmem:[%s196 + $0x10] sm:$0xff]
        %v520 = vld [vmem:[%s196 + $0x18] sm:$0xff]
        %v521 = vld [vmem:[%s196 + $0x20] sm:$0xff]
        %v522 = vld [vmem:[%s196 + $0x28] sm:$0xff]
        %v523 = vld [vmem:[%s196 + $0x30] sm:$0xff]
        %v524 = vld [vmem:[%s196 + $0x38] sm:$0xff]
        %v525 = vld [vmem:[%s196 + $0x40] sm:$0x3]
        %v526 = vld [vmem:[%s196 + $0x48] sm:$0x3]
        %v527 = vld [vmem:[%s196 + $0x50] sm:$0x3]
        %v528 = vld [vmem:[%s196 + $0x58] sm:$0x3]
        %v529 = vld [vmem:[%s196 + $0x60] sm:$0x3]
        %v530 = vld [vmem:[%s196 + $0x68] sm:$0x3]
        %v531 = vld [vmem:[%s196 + $0x70] sm:$0x3]
        %v532 = vld [vmem:[%s196 + $0x78] sm:$0x3]
        %v533 = vld [vmem:[%s2] sm:$0xff]
        %v534 = vld [vmem:[%s2 + $0x8] sm:$0x3]
        %536 = vset.pattern.permute.xlu0 0
        %537 = vperm.xlu0 %536, %v533
        %v538 = vpop.permute.xlu0 %537
        %541 = vset.pattern.permute.xlu0 0
        %542 = vperm.xlu0 %541, %v534
        %v543 = vpop.permute.xlu0 %542
        %v545 = vadd.f32 %v517, %v538
        %v546 = vadd.f32 %v518, %v538
        %v547 = vadd.f32 %v519, %v538
        %v548 = vadd.f32 %v520, %v538
        %v549 = vadd.f32 %v521, %v538
        %v550 = vadd.f32 %v522, %v538
        %v551 = vadd.f32 %v523, %v538
        %v552 = vadd.f32 %v524, %v538
        %v553 = vadd.f32 %v525, %v543
        %v554 = vadd.f32 %v526, %v543
        %v555 = vadd.f32 %v527, %v543
        %v556 = vadd.f32 %v528, %v543
        %v557 = vadd.f32 %v529, %v543
        %v558 = vadd.f32 %v530, %v543
        %v559 = vadd.f32 %v531, %v543
        %v560 = vadd.f32 %v532, %v543
        %561 = vst [vmem:[%s196] sm:$0xff] %v545
        %562 = vst [vmem:[%s196 + $0x8] sm:$0xff] %v546
        %563 = vst [vmem:[%s196 + $0x10] sm:$0xff] %v547
        %564 = vst [vmem:[%s196 + $0x18] sm:$0xff] %v548
        %565 = vst [vmem:[%s196 + $0x20] sm:$0xff] %v549
        %566 = vst [vmem:[%s196 + $0x28] sm:$0xff] %v550
        %567 = vst [vmem:[%s196 + $0x30] sm:$0xff] %v551
        %vm568 = vcmask 531456
        %569 = vst.msk [vmem:[%s196 + $0x38] sm:$0xff] %vm568, %v552
        %570 = vst [vmem:[%s196 + $0x40] sm:$0x3] %v553
        %571 = vst [vmem:[%s196 + $0x48] sm:$0x3] %v554
        %572 = vst [vmem:[%s196 + $0x50] sm:$0x3] %v555
        %573 = vst [vmem:[%s196 + $0x58] sm:$0x3] %v556
        %574 = vst [vmem:[%s196 + $0x60] sm:$0x3] %v557
        %575 = vst [vmem:[%s196 + $0x68] sm:$0x3] %v558
        %576 = vst [vmem:[%s196 + $0x70] sm:$0x3] %v559
        %vm577 = vcmask 525312
        %578 = vst.msk [vmem:[%s196 + $0x78] sm:$0x3] %vm577, %v560
      $region44: #{sample_model_forward.3} parent=31 // pred_fallthru
        _
      %p579 = scmp.lt.s32.totalorder %s18, 1
      %s580 = scalar_select %p579, %s18, 1
      %s581 = smul.addr %s580, 16
      %s582 = smul.addr %s581, 8
      %s583 = scalar_lea.vmem %s3, %s582
      // Predicated region
      $region45: #{sample_model_forward.3} parent=31 // pred_check
        %p584 = pneg %p114
      $region46: #{sample_model_forward.3} parent=31 // pred_check_branch
        %586 = sbr.rel (%p584) target = $region48
      $region47: #{sample_model_forward.3} parent=31 // pred_region
        _
      $region48: #{sample_model_forward.3} parent=31 // pred_fallthru
        _
    $region32: #{sample_model_forward.3} parent=5 // pred_fallthru
      _
    %p587 = scmp.le.s32.totalorder 2, %s9
    // Predicated region
    $region49: #{sample_model_forward.3} parent=5 // pred_check
      %p588 = pneg %p587
    $region50: #{sample_model_forward.3} parent=5 // pred_check_branch
      %590 = sbr.rel (%p588) target = $region52
    $region51: #{sample_model_forward.3} parent=5 // pred_region
      %s591 = ssub.s32 %s9, 2
      // Predicated region
      $region53: #{sample_model_forward.3} parent=51 // pred_check
        %p592 = pneg %p120
      $region54: #{sample_model_forward.3} parent=51 // pred_check_branch
        %594 = sbr.rel (%p592) target = $region56
      $region55: #{sample_model_forward.3} parent=51 // pred_region
        %p595 = scmp.lt.s32.totalorder %s20, 1
        %s596 = scalar_select %p595, %s20, 1
        %s597 = smul.addr %s596, 16
        %s598 = smul.addr %s597, 8
        %s599 = scalar_lea.vmem %s3, %s598
      $region56: #{sample_model_forward.3} parent=51 // pred_fallthru
        _
    $region52: #{sample_model_forward.3} parent=5 // pred_fallthru
      _
  $region6: #{sample_model_forward.3} parent=0 // loop_footer
    %s13 = sadd.s32 1, %s9
  $region7: #{sample_model_forward.3} parent=0 // loop_footer_branch
    %8 = sbr.rel target = $region3
  $region8: #{sample_model_forward.3} parent=0 // loop_exit
    _

// kernel: sample_model_forward.4
$region0: #{sample_model_forward.4}
  #allocation0 [shape = 'u32[]', space=smem, size = 0x4, offset = 0x4, fixed_abs, tag = 'smem constant byte address 0x4 - core index']
  #allocation1 [shape = 'u32[72,128]{1,0:T(1,128)}', space=vmem, size = 0x9000, scoped, tag = 'internal scratch']
  %s0 = inlined_call_operand.vmem [shape: bf16[2,9,90,225], index: 0, kind: input, shape index: {}]
  %s1 = inlined_call_operand.vmem [shape: bf16[20,90], index: 1, kind: input, shape index: {}]
  %s2 = inlined_call_operand.vmem [shape: f32[20,1], index: 2, kind: input, shape index: {}]
  %s3 = inlined_call_operand.vmem [shape: f32[2,20,225], index: 3, kind: output, shape index: {}]
  %s4 = sld [smem:[#allocation0]]
  $region57: #{sample_model_forward.4} parent=0
    _
  %s6 = ssub.s32 1, %s4
  %s7 = scalar_select 0, %s6, %s4
  loop: start=0, step=1, limit=20
  $region2: #{sample_model_forward.4} parent=0 // loop_pre_header
    _
  $region3: #{sample_model_forward.4} parent=0 // loop_header
    %s9 = sphi 0, %s13
    %p10 = scmp.ge.s32.totalorder %s9, 20
    %s16 = sphi 0, %s28
    %s17 = sphi 0, %s24
    %s18 = sphi 0, %s16
    %s19 = sphi 0, %s17
    %s20 = sphi 0, %s18
    %s21 = sphi 0, %s19
    %s33 = sphi 0, %s35
    %s36 = sphi 0, %s33
    %s37 = sphi 0, %s36
    %s53 = sphi 0, %s37
    %s57 = sphi 0, %s57
    %s59 = sphi 0, %s57
    %s60 = sphi 0, %s59
    %s74 = sphi 0, %s60
    %s78 = sphi 0, %s78
    %s80 = sphi 0, %s78
    %s81 = sphi 0, %s80
    %s95 = sphi 0, %s81
    %s101 = sphi 0, %s103
    %s104 = sphi 0, %s101
    %s105 = sphi 0, %s104
    %s121 = sphi 0, %s105
  $region4: #{sample_model_forward.4} parent=0 // loop_header_branch
    %12 = sbr.rel (%p10) target = $region8
  $region5: #{sample_model_forward.4} parent=0 // loop_body
    %s14 = ssub.s32 %s9, 1
    %s15 = ssub.s32 %s9, 2
    %s22 = sadd.s32 1, %s17
    %p23 = scmp.ge.s32.totalorder %s22, 9
    %s24 = scalar_select %p23, 0, %s22
    %s25 = sadd.s32 1, %s16
    %s26 = scalar_select %p23, %s25, %s16
    %p27 = scmp.ge.s32.totalorder %s26, 2
    %s28 = scalar_select %p27, 0, %s26
    %s29 = ssub.s32 %s16, %s28
    %s30 = ssub.s32 %s17, %s24
    %s31 = sor.u32 %s29, %s30
    %p32 = scmp.eq.s32.totalorder %s31, 0
    %s34 = sadd.s32 %s33, 1
    %s35 = scalar_select %p32, %s33, %s34
    %p38 = pneg %p32
    %p39 = scmp.eq.s32.totalorder %s9, 17
    %p40 = por %p38, %p39
    %p41 = scmp.ne.s32.totalorder %s33, %s36
    %p42 = scmp.eq.s32.totalorder %s9, 0
    %p43 = por %p41, %p42
    %p44 = scmp.ne.s32.totalorder %s33, %s36
    %p45 = scmp.eq.s32.totalorder %s14, 17
    %p46 = por %p44, %p45
    %p47 = scmp.ne.s32.totalorder %s36, %s37
    %p48 = scmp.eq.s32.totalorder %s14, 0
    %p49 = por %p47, %p48
    %p50 = scmp.ne.s32.totalorder %s36, %s37
    %p51 = scmp.eq.s32.totalorder %s15, 17
    %p52 = por %p50, %p51
    %p54 = scmp.ne.s32.totalorder %s37, %s53
    %p55 = scmp.eq.s32.totalorder %s15, 0
    %p56 = por %p54, %p55
    %s58 = sadd.s32 %s57, 1
    %p61 = scmp.eq.s32.totalorder %s9, 17
    %p62 = scmp.ne.s32.totalorder %s57, %s59
    %p63 = scmp.eq.s32.totalorder %s9, 0
    %p64 = por %p62, %p63
    %p65 = scmp.ne.s32.totalorder %s57, %s59
    %p66 = scmp.eq.s32.totalorder %s14, 17
    %p67 = por %p65, %p66
    %p68 = scmp.ne.s32.totalorder %s59, %s60
    %p69 = scmp.eq.s32.totalorder %s14, 0
    %p70 = por %p68, %p69
    %p71 = scmp.ne.s32.totalorder %s59, %s60
    %p72 = scmp.eq.s32.totalorder %s15, 17
    %p73 = por %p71, %p72
    %p75 = scmp.ne.s32.totalorder %s60, %s74
    %p76 = scmp.eq.s32.totalorder %s15, 0
    %p77 = por %p75, %p76
    %s79 = sadd.s32 %s78, 1
    %p82 = scmp.eq.s32.totalorder %s9, 17
    %p83 = scmp.ne.s32.totalorder %s78, %s80
    %p84 = scmp.eq.s32.totalorder %s9, 0
    %p85 = por %p83, %p84
    %p86 = scmp.ne.s32.totalorder %s78, %s80
    %p87 = scmp.eq.s32.totalorder %s14, 17
    %p88 = por %p86, %p87
    %p89 = scmp.ne.s32.totalorder %s80, %s81
    %p90 = scmp.eq.s32.totalorder %s14, 0
    %p91 = por %p89, %p90
    %p92 = scmp.ne.s32.totalorder %s80, %s81
    %p93 = scmp.eq.s32.totalorder %s15, 17
    %p94 = por %p92, %p93
    %p96 = scmp.ne.s32.totalorder %s81, %s95
    %p97 = scmp.eq.s32.totalorder %s15, 0
    %p98 = por %p96, %p97
    %s99 = ssub.s32 %s16, %s28
    %p100 = scmp.eq.s32.totalorder %s99, 0
    %s102 = sadd.s32 %s101, 1
    %s103 = scalar_select %p100, %s101, %s102
    %p106 = pneg %p100
    %p107 = scmp.eq.s32.totalorder %s9, 17
    %p108 = por %p106, %p107
    %p109 = scmp.ne.s32.totalorder %s101, %s104
    %p110 = scmp.eq.s32.totalorder %s9, 0
    %p111 = por %p109, %p110
    %p112 = scmp.ne.s32.totalorder %s101, %s104
    %p113 = scmp.eq.s32.totalorder %s14, 17
    %p114 = por %p112, %p113
    %p115 = scmp.ne.s32.totalorder %s104, %s105
    %p116 = scmp.eq.s32.totalorder %s14, 0
    %p117 = por %p115, %p116
    %p118 = scmp.ne.s32.totalorder %s104, %s105
    %p119 = scmp.eq.s32.totalorder %s15, 17
    %p120 = por %p118, %p119
    %p122 = scmp.ne.s32.totalorder %s105, %s121
    %p123 = scmp.eq.s32.totalorder %s15, 0
    %p124 = por %p122, %p123
    %p125 = scmp.le.s32.totalorder 1, %s9
    %p126 = scmp.lt.s32.totalorder %s9, 19
    %p127 = pnand %p125, %p126
    %p128 = pneg %p127
    // Predicated region
    $region9: #{sample_model_forward.4} parent=5 // pred_check
      _
    $region10: #{sample_model_forward.4} parent=5 // pred_check_branch
      %130 = sbr.rel (%p127) target = $region12
    $region11: #{sample_model_forward.4} parent=5 // pred_region
      %s131 = ssub.s32 %s9, 1
      // Predicated region
      $region13: #{sample_model_forward.4} parent=11 // pred_check
        %p132 = pneg %p70
      $region14: #{sample_model_forward.4} parent=11 // pred_check_branch
        %134 = sbr.rel (%p132) target = $region16
      $region15: #{sample_model_forward.4} parent=11 // pred_region
        _
      $region16: #{sample_model_forward.4} parent=11 // pred_fallthru
        _
      // Predicated region
      $region17: #{sample_model_forward.4} parent=11 // pred_check
        %p135 = pneg %p91
      $region18: #{sample_model_forward.4} parent=11 // pred_check_branch
        %137 = sbr.rel (%p135) target = $region20
      $region19: #{sample_model_forward.4} parent=11 // pred_region
        _
      $region20: #{sample_model_forward.4} parent=11 // pred_fallthru
        _
    $region12: #{sample_model_forward.4} parent=5 // pred_fallthru
      _
    %p138 = scmp.lt.s32.totalorder %s9, 18
    // Predicated region
    $region21: #{sample_model_forward.4} parent=5 // pred_check
      %p139 = pneg %p138
    $region22: #{sample_model_forward.4} parent=5 // pred_check_branch
      %141 = sbr.rel (%p139) target = $region24
    $region23: #{sample_model_forward.4} parent=5 // pred_region
      // Predicated region
      $region25: #{sample_model_forward.4} parent=23 // pred_check
        %p142 = pneg %p43
      $region26: #{sample_model_forward.4} parent=23 // pred_check_branch
        %144 = sbr.rel (%p142) target = $region28
      $region27: #{sample_model_forward.4} parent=23 // pred_region
        %p145 = scmp.lt.s32.totalorder %s16, 1
        %s146 = scalar_select %p145, %s16, 1
        %p147 = scmp.lt.s32.totalorder %s17, 8
        %s148 = scalar_select %p147, %s17, 8
        %s149 = smul.addr %s148, 24
        %s150 = smul.addr %s146, 216
        %s151 = sadd.s32 %s149, %s150
        %s152 = smul.addr %s151, 4
        %s153 = scalar_lea.vmem %s0, %s152
      $region28: #{sample_model_forward.4} parent=23 // pred_fallthru
        _
    $region24: #{sample_model_forward.4} parent=5 // pred_fallthru
      _
    %p154 = scmp.le.s32.totalorder 1, %s9
    %p155 = scmp.lt.s32.totalorder %s9, 19
    %p156 = pnand %p154, %p155
    %p157 = pneg %p156
    // Predicated region
    $region29: #{sample_model_forward.4} parent=5 // pred_check
      _
    $region30: #{sample_model_forward.4} parent=5 // pred_check_branch
      %159 = sbr.rel (%p156) target = $region32
    $region31: #{sample_model_forward.4} parent=5 // pred_region
      %s160 = ssub.s32 %s9, 1
      %p161 = scmp.lt.s32.totalorder %s18, 1
      %s162 = scalar_select %p161, %s18, 1
      %p163 = scmp.lt.s32.totalorder %s19, 8
      %s164 = scalar_select %p163, %s19, 8
      %s165 = smul.addr %s164, 24
      %s166 = smul.addr %s162, 216
      %s167 = sadd.s32 %s165, %s166
      %s168 = smul.addr %s167, 4
      %s169 = scalar_lea.vmem %s0, %s168
      %p170 = pneg %p49
      %p171 = pneg %p46
      %p172 = pneg %p70
      %p173 = pneg %p67
      %p174 = pneg %p91
      %p175 = pneg %p88
      %p176 = pneg %p117
      %p177 = pneg %p114
      %p178 = scmp.lt.s32.totalorder %s18, 1
      %s179 = scalar_select %p178, %s18, 1
      %s180 = smul.addr %s179, 6
      %s181 = smul.addr %s180, 8
      %s182 = scalar_lea.vmem %s3, %s181
      %p183 = scmp.lt.s32.totalorder %s18, 1
      %s184 = scalar_select %p183, %s18, 1
      %p185 = scmp.lt.s32.totalorder %s19, 8
      %s186 = scalar_select %p185, %s19, 8
      %s187 = smul.addr %s186, 24
      %s188 = smul.addr %s184, 216
      %s189 = sadd.s32 %s187, %s188
      %s190 = smul.addr %s189, 4
      %s191 = scalar_lea.vmem %s0, %s190
      %p192 = scmp.lt.s32.totalorder %s18, 1
      %s193 = scalar_select %p192, %s18, 1
      %s194 = smul.addr %s193, 6
      %s195 = smul.addr %s194, 8
      %s196 = scalar_lea.vmem %s3, %s195
      %v198 = vld [vmem:[%s1] sm:$0xf]
      %v199 = vld [vmem:[%s1 + $0x4] sm:$0xf]
      %v200 = vld [vmem:[%s1 + $0x8] sm:$0x3]
      %v201 = vld [vmem:[%s191] sm:$0xff]
      %v202 = vld [vmem:[%s191 + $0x8] sm:$0xff]
      %v203 = vld [vmem:[%s191 + $0x10] sm:$0xff]
      %v204 = vld [vmem:[%s191 + $0x18] sm:$0xff]
      %v205 = vld [vmem:[%s191 + $0x20] sm:$0xff]
      %v206 = vld [vmem:[%s191 + $0x28] sm:$0xff]
      %v207 = vld [vmem:[%s191 + $0x30] sm:$0xff]
      %v208 = vld [vmem:[%s191 + $0x38] sm:$0xff]
      %v209 = vld [vmem:[%s191 + $0x40] sm:$0xff]
      %v210 = vld [vmem:[%s191 + $0x48] sm:$0xff]
      %v211 = vld [vmem:[%s191 + $0x50] sm:$0xff]
      %v212 = vld [vmem:[%s191 + $0x58] sm:$0x11]
      %v216 = vunpack.c.l.b16 %v198
      %v217 = vunpack.c.l.b16 %v199
      %v218 = vunpack.c.l.b16 %v200
      %v219 = vpack.c.b16 %v217, %v216
      %v220 = vpack.c.b16 %v218, %v218
      %v233 = vunpack.c.l.b16 %v201
      %v234 = vunpack.c.h.b16 %v201
      %v235 = vunpack.c.l.b16 %v202
      %v236 = vunpack.c.h.b16 %v202
      %v237 = vunpack.c.l.b16 %v203
      %v238 = vunpack.c.h.b16 %v203
      %v239 = vunpack.c.l.b16 %v204
      %v240 = vunpack.c.h.b16 %v204
      %v241 = vunpack.c.l.b16 %v205
      %v242 = vunpack.c.h.b16 %v205
      %v243 = vunpack.c.l.b16 %v206
      %v244 = vunpack.c.h.b16 %v206
      %v245 = vunpack.c.l.b16 %v207
      %v246 = vunpack.c.h.b16 %v207
      %v247 = vunpack.c.l.b16 %v208
      %v248 = vunpack.c.h.b16 %v208
      %v249 = vunpack.c.l.b16 %v209
      %v250 = vunpack.c.h.b16 %v209
      %v251 = vunpack.c.l.b16 %v210
      %v252 = vunpack.c.h.b16 %v210
      %v253 = vunpack.c.l.b16 %v211
      %v254 = vunpack.c.h.b16 %v211
      %v255 = vunpack.c.l.b16 %v212
      %v256 = vunpack.c.h.b16 %v212
      %v257 = vpack.c.b16 %v235, %v233
      %v258 = vpack.c.b16 %v236, %v234
      %v259 = vpack.c.b16 %v239, %v237
      %v260 = vpack.c.b16 %v240, %v238
      %v261 = vpack.c.b16 %v243, %v241
      %v262 = vpack.c.b16 %v244, %v242
      %v263 = vpack.c.b16 %v247, %v245
      %v264 = vpack.c.b16 %v248, %v246
      %v265 = vpack.c.b16 %v251, %v249
      %v266 = vpack.c.b16 %v252, %v250
      %v267 = vpack.c.b16 %v255, %v253
      %v268 = vpack.c.b16 %v256, %v254
      %vm279 = vcmask 736256
      %v281 = vsel %vm279, %v219, 0
      %v284 = vsel %vm279, %v220, 0
      %vm286 = vcmask 1044480
      %v288 = vsel %vm286, %v267, 0
      %v291 = vsel %vm286, %v268, 0
      %293 = vmatpush.bf16.msra.mxu0 0
      %294 = vmatpush.bf16.msra.mxu0 0
      %295 = vmatpush.bf16.msra.mxu0 %v288
      %296 = vmatpush.bf16.msra.mxu0 %v265
      %297 = vmatpush.bf16.msra.mxu0 %v263
      %298 = vmatpush.bf16.msra.mxu0 %v261
      %299 = vmatpush.bf16.msra.mxu0 %v259
      %300 = vmatpush.bf16.msra.mxu0 %v257
      %301 = vmatmul.bf16.gmra.mxu0 %v281
      %v302 = vpop.f32.mrf.mxu0
      %v303 = vadd.f32 0.0, %v302
      %v304 = vpop.f32.mrf.mxu0
      %v305 = vadd.f32 0.0, %v304
      %306 = vmatmul.bf16.gmra.mxu0 %v284
      %v307 = vpop.f32.mrf.mxu0
      %v308 = vadd.f32 0.0, %v307
      %v309 = vpop.f32.mrf.mxu0
      %310 = vdwg.mxu0
      %311 = vmatpush.bf16.msra.mxu0 0
      %312 = vmatpush.bf16.msra.mxu0 0
      %313 = vmatpush.bf16.msra.mxu0 %v291
      %314 = vmatpush.bf16.msra.mxu0 %v266
      %315 = vmatpush.bf16.msra.mxu0 %v264
      %316 = vmatpush.bf16.msra.mxu0 %v262
      %317 = vmatpush.bf16.msra.mxu0 %v260
      %318 = vmatpush.bf16.msra.mxu0 %v258
      %319 = vmatmul.bf16.gmra.mxu0 %v281
      %v320 = vpop.f32.mrf.mxu0
      %v321 = vadd.f32 0.0, %v320
      %v322 = vpop.f32.mrf.mxu0
      %v323 = vadd.f32 0.0, %v322
      %324 = vmatmul.bf16.gmra.mxu0 %v284
      %v325 = vpop.f32.mrf.mxu0
      %v326 = vadd.f32 0.0, %v325
      %v327 = vpop.f32.mrf.mxu0
      %328 = vdwg.mxu0
      %p329 = scmp.eq.s32.totalorder %s19, 0
      // Predicated region
      $region33: #{sample_model_forward.4} parent=31 // pred_check
        %p330 = pneg %p329
      $region34: #{sample_model_forward.4} parent=31 // pred_check_branch
        %332 = sbr.rel (%p330) target = $region36
      $region35: #{sample_model_forward.4} parent=31 // pred_region
        %333 = vst [vmem:[%s196] sm:$0xff] %v303
        %vm334 = vcmask 793600
        %335 = vst.msk [vmem:[%s196 + $0x8] sm:$0xff] %vm334, %v321
        %336 = vst [vmem:[%s196 + $0x10] sm:$0xff] %v305
        %337 = vst.msk [vmem:[%s196 + $0x18] sm:$0xff] %vm334, %v323
        %338 = vst [vmem:[%s196 + $0x20] sm:$0xf] %v308
        %vm339 = vcmask 789504
        %340 = vst.msk [vmem:[%s196 + $0x28] sm:$0xf] %vm339, %v326
      $region36: #{sample_model_forward.4} parent=31 // pred_fallthru
        _
      %p341 = scmp.gt.s32.totalorder %s19, 0
      // Predicated region
      $region37: #{sample_model_forward.4} parent=31 // pred_check
        %p342 = pneg %p341
      $region38: #{sample_model_forward.4} parent=31 // pred_check_branch
        %344 = sbr.rel (%p342) target = $region40
      $region39: #{sample_model_forward.4} parent=31 // pred_region
        %v345 = vld [vmem:[%s196] sm:$0xff]
        %v346 = vld [vmem:[%s196 + $0x8] sm:$0xff]
        %v347 = vld [vmem:[%s196 + $0x10] sm:$0xff]
        %v348 = vld [vmem:[%s196 + $0x18] sm:$0xff]
        %v349 = vld [vmem:[%s196 + $0x20] sm:$0xf]
        %v350 = vld [vmem:[%s196 + $0x28] sm:$0xf]
        %v351 = vmax.f32 %v345, %v303
        %v352 = vmax.f32 %v346, %v321
        %v353 = vmax.f32 %v347, %v305
        %v354 = vmax.f32 %v348, %v323
        %v355 = vmax.f32 %v349, %v308
        %v356 = vmax.f32 %v350, %v326
        %357 = vst [vmem:[%s196] sm:$0xff] %v351
        %vm358 = vcmask 793600
        %359 = vst.msk [vmem:[%s196 + $0x8] sm:$0xff] %vm358, %v352
        %360 = vst [vmem:[%s196 + $0x10] sm:$0xff] %v353
        %361 = vst.msk [vmem:[%s196 + $0x18] sm:$0xff] %vm358, %v354
        %362 = vst [vmem:[%s196 + $0x20] sm:$0xf] %v355
        %vm363 = vcmask 789504
        %364 = vst.msk [vmem:[%s196 + $0x28] sm:$0xf] %vm363, %v356
      $region40: #{sample_model_forward.4} parent=31 // pred_fallthru
        _
      %p365 = scmp.eq.s32.totalorder %s19, 8
      // Predicated region
      $region41: #{sample_model_forward.4} parent=31 // pred_check
        %p366 = pneg %p365
      $region42: #{sample_model_forward.4} parent=31 // pred_check_branch
        %368 = sbr.rel (%p366) target = $region44
      $region43: #{sample_model_forward.4} parent=31 // pred_region
        %v369 = vld [vmem:[%s196] sm:$0xff]
        %v370 = vld [vmem:[%s196 + $0x8] sm:$0xff]
        %v371 = vld [vmem:[%s196 + $0x10] sm:$0xff]
        %v372 = vld [vmem:[%s196 + $0x18] sm:$0xff]
        %v373 = vld [vmem:[%s196 + $0x20] sm:$0xf]
        %v374 = vld [vmem:[%s196 + $0x28] sm:$0xf]
        %v375 = vld [vmem:[%s2] sm:$0xff]
        %v376 = vld [vmem:[%s2 + $0x8] sm:$0xff]
        %v377 = vld [vmem:[%s2 + $0x10] sm:$0xf]
        %379 = vset.pattern.permute.xlu0 0
        %380 = vperm.xlu0 %379, %v375
        %v381 = vpop.permute.xlu0 %380
        %384 = vset.pattern.permute.xlu0 0
        %385 = vperm.xlu0 %384, %v376
        %v386 = vpop.permute.xlu0 %385
        %389 = vset.pattern.permute.xlu0 0
        %390 = vperm.xlu0 %389, %v377
        %v391 = vpop.permute.xlu0 %390
        %v393 = vadd.f32 %v369, %v381
        %v394 = vadd.f32 %v370, %v381
        %v395 = vadd.f32 %v371, %v386
        %v396 = vadd.f32 %v372, %v386
        %v397 = vadd.f32 %v373, %v391
        %v398 = vadd.f32 %v374, %v391
        %399 = vst [vmem:[%s196] sm:$0xff] %v393
        %vm400 = vcmask 793600
        %401 = vst.msk [vmem:[%s196 + $0x8] sm:$0xff] %vm400, %v394
        %402 = vst [vmem:[%s196 + $0x10] sm:$0xff] %v395
        %403 = vst.msk [vmem:[%s196 + $0x18] sm:$0xff] %vm400, %v396
        %404 = vst [vmem:[%s196 + $0x20] sm:$0xf] %v397
        %vm405 = vcmask 789504
        %406 = vst.msk [vmem:[%s196 + $0x28] sm:$0xf] %vm405, %v398
      $region44: #{sample_model_forward.4} parent=31 // pred_fallthru
        _
      %p407 = scmp.lt.s32.totalorder %s18, 1
      %s408 = scalar_select %p407, %s18, 1
      %s409 = smul.addr %s408, 6
      %s410 = smul.addr %s409, 8
      %s411 = scalar_lea.vmem %s3, %s410
      // Predicated region
      $region45: #{sample_model_forward.4} parent=31 // pred_check
        %p412 = pneg %p114
      $region46: #{sample_model_forward.4} parent=31 // pred_check_branch
        %414 = sbr.rel (%p412) target = $region48
      $region47: #{sample_model_forward.4} parent=31 // pred_region
        _
      $region48: #{sample_model_forward.4} parent=31 // pred_fallthru
        _
    $region32: #{sample_model_forward.4} parent=5 // pred_fallthru
      _
    %p415 = scmp.le.s32.totalorder 2, %s9
    // Predicated region
    $region49: #{sample_model_forward.4} parent=5 // pred_check
      %p416 = pneg %p415
    $region50: #{sample_model_forward.4} parent=5 // pred_check_branch
      %418 = sbr.rel (%p416) target = $region52
    $region51: #{sample_model_forward.4} parent=5 // pred_region
      %s419 = ssub.s32 %s9, 2
      // Predicated region
      $region53: #{sample_model_forward.4} parent=51 // pred_check
        %p420 = pneg %p120
      $region54: #{sample_model_forward.4} parent=51 // pred_check_branch
        %422 = sbr.rel (%p420) target = $region56
      $region55: #{sample_model_forward.4} parent=51 // pred_region
        %p423 = scmp.lt.s32.totalorder %s20, 1
        %s424 = scalar_select %p423, %s20, 1
        %s425 = smul.addr %s424, 6
        %s426 = smul.addr %s425, 8
        %s427 = scalar_lea.vmem %s3, %s426
      $region56: #{sample_model_forward.4} parent=51 // pred_fallthru
        _
    $region52: #{sample_model_forward.4} parent=5 // pred_fallthru
      _
  $region6: #{sample_model_forward.4} parent=0 // loop_footer
    %s13 = sadd.s32 1, %s9
  $region7: #{sample_model_forward.4} parent=0 // loop_footer_branch
    %8 = sbr.rel target = $region3
  $region8: #{sample_model_forward.4} parent=0 // loop_exit
    _

// kernel: sample_model_forward.5
$region0: #{sample_model_forward.5}
  #allocation0 [shape = 'u32[]', space=smem, size = 0x4, offset = 0x4, fixed_abs, tag = 'smem constant byte address 0x4 - core index']
  #allocation1 [shape = 'u32[72,128]{1,0:T(1,128)}', space=vmem, size = 0x9000, scoped, tag = 'internal scratch']
  %s0 = inlined_call_operand.vmem [shape: f32[2,4500], index: 0, kind: input, shape index: {}]
  %s1 = inlined_call_operand.vmem [shape: f32[4500,32], index: 1, kind: input, shape index: {}]
  %s2 = inlined_call_operand.vmem [shape: f32[1,32], index: 2, kind: input, shape index: {}]
  %s3 = inlined_call_operand.vmem [shape: f32[32,10], index: 3, kind: input, shape index: {}]
  %s4 = inlined_call_operand.vmem [shape: f32[1,10], index: 4, kind: input, shape index: {}]
  %s5 = inlined_call_operand.hbm [shape: f32[2,10], index: 5, kind: output, shape index: {}]
  %s6 = sld [smem:[#allocation0]]
  $region30: #{sample_model_forward.5} parent=0
    _
  %s8 = ssub.s32 1, %s6
  %s9 = scalar_select 0, %s8, %s6
  $region1: #{sample_model_forward.5} parent=0
    #allocation2 [shape = 'u8[1024]{0}', space=vmem, size = 0x400, scoped, tag = 'output window, operand 0, single buffered']
    #allocation3 [shape = 's32[1]{0}', space=sflag, size = 0x4, scoped, tag = 'scoped memory for sample_model_forward.5']
    %10 = vsyncpa [#allocation3], 0
    // Predicated region
    $region2: #{sample_model_forward.5} parent=1 // pred_check
      _
    $region3: #{sample_model_forward.5} parent=1 // pred_check_branch
      %12 = sbr.rel (0) target = $region5
    $region4: #{sample_model_forward.5} parent=1 // pred_region
      _
    $region5: #{sample_model_forward.5} parent=1 // pred_fallthru
      _
    // Predicated region
    $region6: #{sample_model_forward.5} parent=1 // pred_check
      _
    $region7: #{sample_model_forward.5} parent=1 // pred_check_branch
      %14 = sbr.rel (0) target = $region9
    $region8: #{sample_model_forward.5} parent=1 // pred_region
      _
    $region9: #{sample_model_forward.5} parent=1 // pred_fallthru
      _
    // Predicated region
    $region10: #{sample_model_forward.5} parent=1 // pred_check
      _
    $region11: #{sample_model_forward.5} parent=1 // pred_check_branch
      %16 = sbr.rel (0) target = $region13
    $region12: #{sample_model_forward.5} parent=1 // pred_region
      _
    $region13: #{sample_model_forward.5} parent=1 // pred_fallthru
      _
    // Predicated region
    $region14: #{sample_model_forward.5} parent=1 // pred_check
      _
    $region15: #{sample_model_forward.5} parent=1 // pred_check_branch
      %18 = sbr.rel (0) target = $region17
    $region16: #{sample_model_forward.5} parent=1 // pred_region
      _
    $region17: #{sample_model_forward.5} parent=1 // pred_fallthru
      _
    // Predicated region
    $region18: #{sample_model_forward.5} parent=1 // pred_check
      _
    $region19: #{sample_model_forward.5} parent=1 // pred_check_branch
      %20 = sbr.rel (0) target = $region21
    $region20: #{sample_model_forward.5} parent=1 // pred_region
      _
    $region21: #{sample_model_forward.5} parent=1 // pred_fallthru
      _
    %v21 = vld [vmem:[%s0] sm:$0xff]
    %v22 = vld [vmem:[%s0 + $0x8] sm:$0xff]
    %v23 = vld [vmem:[%s0 + $0x10] sm:$0xff]
    %v24 = vld [vmem:[%s0 + $0x18] sm:$0xff]
    %v25 = vld [vmem:[%s0 + $0x20] sm:$0xff]
    %v26 = vld [vmem:[%s0 + $0x28] sm:$0xff]
    %v27 = vld [vmem:[%s0 + $0x30] sm:$0xff]
    %v28 = vld [vmem:[%s0 + $0x38] sm:$0xff]
    %v29 = vld [vmem:[%s0 + $0x40] sm:$0xff]
    %v30 = vld [vmem:[%s1] sm:$0xff]
    %v31 = vld [vmem:[%s1 + $0x8] sm:$0xff]
    %v32 = vld [vmem:[%s1 + $0x10] sm:$0xff]
    %v33 = vld [vmem:[%s1 + $0x18] sm:$0xff]
    %v34 = vld [vmem:[%s1 + $0x20] sm:$0xff]
    %v35 = vld [vmem:[%s1 + $0x28] sm:$0xff]
    %v36 = vld [vmem:[%s1 + $0x30] sm:$0xff]
    %v37 = vld [vmem:[%s1 + $0x38] sm:$0xff]
    %v38 = vld [vmem:[%s1 + $0x40] sm:$0xff]
    %v39 = vld [vmem:[%s1 + $0x48] sm:$0xff]
    %v40 = vld [vmem:[%s1 + $0x50] sm:$0xff]
    %v41 = vld [vmem:[%s1 + $0x58] sm:$0xff]
    %v42 = vld [vmem:[%s1 + $0x60] sm:$0xff]
    %v43 = vld [vmem:[%s1 + $0x68] sm:$0xff]
    %v44 = vld [vmem:[%s1 + $0x70] sm:$0xff]
    %v45 = vld [vmem:[%s1 + $0x78] sm:$0xff]
    %v46 = vld [vmem:[%s1 + $0x80] sm:$0xff]
    %v47 = vld [vmem:[%s1 + $0x88] sm:$0xff]
    %v48 = vld [vmem:[%s1 + $0x90] sm:$0xff]
    %v49 = vld [vmem:[%s1 + $0x98] sm:$0xff]
    %v50 = vld [vmem:[%s1 + $0xa0] sm:$0xff]
    %v51 = vld [vmem:[%s1 + $0xa8] sm:$0xff]
    %v52 = vld [vmem:[%s1 + $0xb0] sm:$0xff]
    %v53 = vld [vmem:[%s1 + $0xb8] sm:$0xff]
    %v54 = vld [vmem:[%s1 + $0xc0] sm:$0xff]
    %v55 = vld [vmem:[%s1 + $0xc8] sm:$0xff]
    %v56 = vld [vmem:[%s1 + $0xd0] sm:$0xff]
    %v57 = vld [vmem:[%s1 + $0xd8] sm:$0xff]
    %v58 = vld [vmem:[%s1 + $0xe0] sm:$0xff]
    %v59 = vld [vmem:[%s1 + $0xe8] sm:$0xff]
    %v60 = vld [vmem:[%s1 + $0xf0] sm:$0xff]
    %v61 = vld [vmem:[%s1 + $0xf8] sm:$0xff]
    %v62 = vld [vmem:[%s1 + $0x100] sm:$0xff]
    %v63 = vld [vmem:[%s1 + $0x108] sm:$0xff]
    %v64 = vld [vmem:[%s1 + $0x110] sm:$0xff]
    %v65 = vld [vmem:[%s1 + $0x118] sm:$0xff]
    %v66 = vld [vmem:[%s1 + $0x120] sm:$0xff]
    %v67 = vld [vmem:[%s1 + $0x128] sm:$0xff]
    %v68 = vld [vmem:[%s1 + $0x130] sm:$0xff]
    %v69 = vld [vmem:[%s1 + $0x138] sm:$0xff]
    %v70 = vld [vmem:[%s1 + $0x140] sm:$0xff]
    %v71 = vld [vmem:[%s1 + $0x148] sm:$0xff]
    %v72 = vld [vmem:[%s1 + $0x150] sm:$0xff]
    %v73 = vld [vmem:[%s1 + $0x158] sm:$0xff]
    %v74 = vld [vmem:[%s1 + $0x160] sm:$0xff]
    %v75 = vld [vmem:[%s1 + $0x168] sm:$0xff]
    %v76 = vld [vmem:[%s1 + $0x170] sm:$0xff]
    %v77 = vld [vmem:[%s1 + $0x178] sm:$0xff]
    %v78 = vld [vmem:[%s1 + $0x180] sm:$0xff]
    %v79 = vld [vmem:[%s1 + $0x188] sm:$0xff]
    %v80 = vld [vmem:[%s1 + $0x190] sm:$0xff]
    %v81 = vld [vmem:[%s1 + $0x198] sm:$0xff]
    %v82 = vld [vmem:[%s1 + $0x1a0] sm:$0xff]
    %v83 = vld [vmem:[%s1 + $0x1a8] sm:$0xff]
    %v84 = vld [vmem:[%s1 + $0x1b0] sm:$0xff]
    %v85 = vld [vmem:[%s1 + $0x1b8] sm:$0xff]
    %v86 = vld [vmem:[%s1 + $0x1c0] sm:$0xff]
    %v87 = vld [vmem:[%s1 + $0x1c8] sm:$0xff]
    %v88 = vld [vmem:[%s1 + $0x1d0] sm:$0xff]
    %v89 = vld [vmem:[%s1 + $0x1d8] sm:$0xff]
    %v90 = vld [vmem:[%s1 + $0x1e0] sm:$0xff]
    %v91 = vld [vmem:[%s1 + $0x1e8] sm:$0xff]
    %v92 = vld [vmem:[%s1 + $0x1f0] sm:$0xff]
    %v93 = vld [vmem:[%s1 + $0x1f8] sm:$0xff]
    %v94 = vld [vmem:[%s1 + $0x200] sm:$0xff]
    %v95 = vld [vmem:[%s1 + $0x208] sm:$0xff]
    %v96 = vld [vmem:[%s1 + $0x210] sm:$0xff]
    %v97 = vld [vmem:[%s1 + $0x218] sm:$0xff]
    %v98 = vld [vmem:[%s1 + $0x220] sm:$0xff]
    %v99 = vld [vmem:[%s1 + $0x228] sm:$0xff]
    %v100 = vld [vmem:[%s1 + $0x230] sm:$0xff]
    %v101 = vld [vmem:[%s1 + $0x238] sm:$0xff]
    %v102 = vld [vmem:[%s1 + $0x240] sm:$0xff]
    %v103 = vld [vmem:[%s1 + $0x248] sm:$0xff]
    %v104 = vld [vmem:[%s1 + $0x250] sm:$0xff]
    %v105 = vld [vmem:[%s1 + $0x258] sm:$0xff]
    %v106 = vld [vmem:[%s1 + $0x260] sm:$0xff]
    %v107 = vld [vmem:[%s1 + $0x268] sm:$0xff]
    %v108 = vld [vmem:[%s1 + $0x270] sm:$0xff]
    %v109 = vld [vmem:[%s1 + $0x278] sm:$0xff]
    %v110 = vld [vmem:[%s1 + $0x280] sm:$0xff]
    %v111 = vld [vmem:[%s1 + $0x288] sm:$0xff]
    %v112 = vld [vmem:[%s1 + $0x290] sm:$0xff]
    %v113 = vld [vmem:[%s1 + $0x298] sm:$0xff]
    %v114 = vld [vmem:[%s1 + $0x2a0] sm:$0xff]
    %v115 = vld [vmem:[%s1 + $0x2a8] sm:$0xff]
    %v116 = vld [vmem:[%s1 + $0x2b0] sm:$0xff]
    %v117 = vld [vmem:[%s1 + $0x2b8] sm:$0xff]
    %v118 = vld [vmem:[%s1 + $0x2c0] sm:$0xff]
    %v119 = vld [vmem:[%s1 + $0x2c8] sm:$0xff]
    %v120 = vld [vmem:[%s1 + $0x2d0] sm:$0xff]
    %v121 = vld [vmem:[%s1 + $0x2d8] sm:$0xff]
    %v122 = vld [vmem:[%s1 + $0x2e0] sm:$0xff]
    %v123 = vld [vmem:[%s1 + $0x2e8] sm:$0xff]
    %v124 = vld [vmem:[%s1 + $0x2f0] sm:$0xff]
    %v125 = vld [vmem:[%s1 + $0x2f8] sm:$0xff]
    %v126 = vld [vmem:[%s1 + $0x300] sm:$0xff]
    %v127 = vld [vmem:[%s1 + $0x308] sm:$0xff]
    %v128 = vld [vmem:[%s1 + $0x310] sm:$0xff]
    %v129 = vld [vmem:[%s1 + $0x318] sm:$0xff]
    %v130 = vld [vmem:[%s1 + $0x320] sm:$0xff]
    %v131 = vld [vmem:[%s1 + $0x328] sm:$0xff]
    %v132 = vld [vmem:[%s1 + $0x330] sm:$0xff]
    %v133 = vld [vmem:[%s1 + $0x338] sm:$0xff]
    %v134 = vld [vmem:[%s1 + $0x340] sm:$0xff]
    %v135 = vld [vmem:[%s1 + $0x348] sm:$0xff]
    %v136 = vld [vmem:[%s1 + $0x350] sm:$0xff]
    %v137 = vld [vmem:[%s1 + $0x358] sm:$0xff]
    %v138 = vld [vmem:[%s1 + $0x360] sm:$0xff]
    %v139 = vld [vmem:[%s1 + $0x368] sm:$0xff]
    %v140 = vld [vmem:[%s1 + $0x370] sm:$0xff]
    %v141 = vld [vmem:[%s1 + $0x378] sm:$0xff]
    %v142 = vld [vmem:[%s1 + $0x380] sm:$0xff]
    %v143 = vld [vmem:[%s1 + $0x388] sm:$0xff]
    %v144 = vld [vmem:[%s1 + $0x390] sm:$0xff]
    %v145 = vld [vmem:[%s1 + $0x398] sm:$0xff]
    %v146 = vld [vmem:[%s1 + $0x3a0] sm:$0xff]
    %v147 = vld [vmem:[%s1 + $0x3a8] sm:$0xff]
    %v148 = vld [vmem:[%s1 + $0x3b0] sm:$0xff]
    %v149 = vld [vmem:[%s1 + $0x3b8] sm:$0xff]
    %v150 = vld [vmem:[%s1 + $0x3c0] sm:$0xff]
    %v151 = vld [vmem:[%s1 + $0x3c8] sm:$0xff]
    %v152 = vld [vmem:[%s1 + $0x3d0] sm:$0xff]
    %v153 = vld [vmem:[%s1 + $0x3d8] sm:$0xff]
    %v154 = vld [vmem:[%s1 + $0x3e0] sm:$0xff]
    %v155 = vld [vmem:[%s1 + $0x3e8] sm:$0xff]
    %v156 = vld [vmem:[%s1 + $0x3f0] sm:$0xff]
    %v157 = vld [vmem:[%s1 + $0x3f8] sm:$0xff]
    %v158 = vld [vmem:[%s1 + $0x400] sm:$0xff]
    %v159 = vld [vmem:[%s1 + $0x408] sm:$0xff]
    %v160 = vld [vmem:[%s1 + $0x410] sm:$0xff]
    %v161 = vld [vmem:[%s1 + $0x418] sm:$0xff]
    %v162 = vld [vmem:[%s1 + $0x420] sm:$0xff]
    %v163 = vld [vmem:[%s1 + $0x428] sm:$0xff]
    %v164 = vld [vmem:[%s1 + $0x430] sm:$0xff]
    %v165 = vld [vmem:[%s1 + $0x438] sm:$0xff]
    %v166 = vld [vmem:[%s1 + $0x440] sm:$0xff]
    %v167 = vld [vmem:[%s1 + $0x448] sm:$0xff]
    %v168 = vld [vmem:[%s1 + $0x450] sm:$0xff]
    %v169 = vld [vmem:[%s1 + $0x458] sm:$0xff]
    %v170 = vld [vmem:[%s1 + $0x460] sm:$0xff]
    %v171 = vld [vmem:[%s1 + $0x468] sm:$0xff]
    %v172 = vld [vmem:[%s1 + $0x470] sm:$0xff]
    %v173 = vld [vmem:[%s1 + $0x478] sm:$0xff]
    %v174 = vld [vmem:[%s1 + $0x480] sm:$0xff]
    %v175 = vld [vmem:[%s1 + $0x488] sm:$0xff]
    %v176 = vld [vmem:[%s1 + $0x490] sm:$0xff]
    %v177 = vld [vmem:[%s1 + $0x498] sm:$0xff]
    %v178 = vld [vmem:[%s1 + $0x4a0] sm:$0xff]
    %v179 = vld [vmem:[%s1 + $0x4a8] sm:$0xff]
    %v180 = vld [vmem:[%s1 + $0x4b0] sm:$0xff]
    %v181 = vld [vmem:[%s1 + $0x4b8] sm:$0xff]
    %v182 = vld [vmem:[%s1 + $0x4c0] sm:$0xff]
    %v183 = vld [vmem:[%s1 + $0x4c8] sm:$0xff]
    %v184 = vld [vmem:[%s1 + $0x4d0] sm:$0xff]
    %v185 = vld [vmem:[%s1 + $0x4d8] sm:$0xff]
    %v186 = vld [vmem:[%s1 + $0x4e0] sm:$0xff]
    %v187 = vld [vmem:[%s1 + $0x4e8] sm:$0xff]
    %v188 = vld [vmem:[%s1 + $0x4f0] sm:$0xff]
    %v189 = vld [vmem:[%s1 + $0x4f8] sm:$0xff]
    %v190 = vld [vmem:[%s1 + $0x500] sm:$0xff]
    %v191 = vld [vmem:[%s1 + $0x508] sm:$0xff]
    %v192 = vld [vmem:[%s1 + $0x510] sm:$0xff]
    %v193 = vld [vmem:[%s1 + $0x518] sm:$0xff]
    %v194 = vld [vmem:[%s1 + $0x520] sm:$0xff]
    %v195 = vld [vmem:[%s1 + $0x528] sm:$0xff]
    %v196 = vld [vmem:[%s1 + $0x530] sm:$0xff]
    %v197 = vld [vmem:[%s1 + $0x538] sm:$0xff]
    %v198 = vld [vmem:[%s1 + $0x540] sm:$0xff]
    %v199 = vld [vmem:[%s1 + $0x548] sm:$0xff]
    %v200 = vld [vmem:[%s1 + $0x550] sm:$0xff]
    %v201 = vld [vmem:[%s1 + $0x558] sm:$0xff]
    %v202 = vld [vmem:[%s1 + $0x560] sm:$0xff]
    %v203 = vld [vmem:[%s1 + $0x568] sm:$0xff]
    %v204 = vld [vmem:[%s1 + $0x570] sm:$0xff]
    %v205 = vld [vmem:[%s1 + $0x578] sm:$0xff]
    %v206 = vld [vmem:[%s1 + $0x580] sm:$0xff]
    %v207 = vld [vmem:[%s1 + $0x588] sm:$0xff]
    %v208 = vld [vmem:[%s1 + $0x590] sm:$0xff]
    %v209 = vld [vmem:[%s1 + $0x598] sm:$0xff]
    %v210 = vld [vmem:[%s1 + $0x5a0] sm:$0xff]
    %v211 = vld [vmem:[%s1 + $0x5a8] sm:$0xff]
    %v212 = vld [vmem:[%s1 + $0x5b0] sm:$0xff]
    %v213 = vld [vmem:[%s1 + $0x5b8] sm:$0xff]
    %v214 = vld [vmem:[%s1 + $0x5c0] sm:$0xff]
    %v215 = vld [vmem:[%s1 + $0x5c8] sm:$0xff]
    %v216 = vld [vmem:[%s1 + $0x5d0] sm:$0xff]
    %v217 = vld [vmem:[%s1 + $0x5d8] sm:$0xff]
    %v218 = vld [vmem:[%s1 + $0x5e0] sm:$0xff]
    %v219 = vld [vmem:[%s1 + $0x5e8] sm:$0xff]
    %v220 = vld [vmem:[%s1 + $0x5f0] sm:$0xff]
    %v221 = vld [vmem:[%s1 + $0x5f8] sm:$0xff]
    %v222 = vld [vmem:[%s1 + $0x600] sm:$0xff]
    %v223 = vld [vmem:[%s1 + $0x608] sm:$0xff]
    %v224 = vld [vmem:[%s1 + $0x610] sm:$0xff]
    %v225 = vld [vmem:[%s1 + $0x618] sm:$0xff]
    %v226 = vld [vmem:[%s1 + $0x620] sm:$0xff]
    %v227 = vld [vmem:[%s1 + $0x628] sm:$0xff]
    %v228 = vld [vmem:[%s1 + $0x630] sm:$0xff]
    %v229 = vld [vmem:[%s1 + $0x638] sm:$0xff]
    %v230 = vld [vmem:[%s1 + $0x640] sm:$0xff]
    %v231 = vld [vmem:[%s1 + $0x648] sm:$0xff]
    %v232 = vld [vmem:[%s1 + $0x650] sm:$0xff]
    %v233 = vld [vmem:[%s1 + $0x658] sm:$0xff]
    %v234 = vld [vmem:[%s1 + $0x660] sm:$0xff]
    %v235 = vld [vmem:[%s1 + $0x668] sm:$0xff]
    %v236 = vld [vmem:[%s1 + $0x670] sm:$0xff]
    %v237 = vld [vmem:[%s1 + $0x678] sm:$0xff]
    %v238 = vld [vmem:[%s1 + $0x680] sm:$0xff]
    %v239 = vld [vmem:[%s1 + $0x688] sm:$0xff]
    %v240 = vld [vmem:[%s1 + $0x690] sm:$0xff]
    %v241 = vld [vmem:[%s1 + $0x698] sm:$0xff]
    %v242 = vld [vmem:[%s1 + $0x6a0] sm:$0xff]
    %v243 = vld [vmem:[%s1 + $0x6a8] sm:$0xff]
    %v244 = vld [vmem:[%s1 + $0x6b0] sm:$0xff]
    %v245 = vld [vmem:[%s1 + $0x6b8] sm:$0xff]
    %v246 = vld [vmem:[%s1 + $0x6c0] sm:$0xff]
    %v247 = vld [vmem:[%s1 + $0x6c8] sm:$0xff]
    %v248 = vld [vmem:[%s1 + $0x6d0] sm:$0xff]
    %v249 = vld [vmem:[%s1 + $0x6d8] sm:$0xff]
    %v250 = vld [vmem:[%s1 + $0x6e0] sm:$0xff]
    %v251 = vld [vmem:[%s1 + $0x6e8] sm:$0xff]
    %v252 = vld [vmem:[%s1 + $0x6f0] sm:$0xff]
    %v253 = vld [vmem:[%s1 + $0x6f8] sm:$0xff]
    %v254 = vld [vmem:[%s1 + $0x700] sm:$0xff]
    %v255 = vld [vmem:[%s1 + $0x708] sm:$0xff]
    %v256 = vld [vmem:[%s1 + $0x710] sm:$0xff]
    %v257 = vld [vmem:[%s1 + $0x718] sm:$0xff]
    %v258 = vld [vmem:[%s1 + $0x720] sm:$0xff]
    %v259 = vld [vmem:[%s1 + $0x728] sm:$0xff]
    %v260 = vld [vmem:[%s1 + $0x730] sm:$0xff]
    %v261 = vld [vmem:[%s1 + $0x738] sm:$0xff]
    %v262 = vld [vmem:[%s1 + $0x740] sm:$0xff]
    %v263 = vld [vmem:[%s1 + $0x748] sm:$0xff]
    %v264 = vld [vmem:[%s1 + $0x750] sm:$0xff]
    %v265 = vld [vmem:[%s1 + $0x758] sm:$0xff]
    %v266 = vld [vmem:[%s1 + $0x760] sm:$0xff]
    %v267 = vld [vmem:[%s1 + $0x768] sm:$0xff]
    %v268 = vld [vmem:[%s1 + $0x770] sm:$0xff]
    %v269 = vld [vmem:[%s1 + $0x778] sm:$0xff]
    %v270 = vld [vmem:[%s1 + $0x780] sm:$0xff]
    %v271 = vld [vmem:[%s1 + $0x788] sm:$0xff]
    %v272 = vld [vmem:[%s1 + $0x790] sm:$0xff]
    %v273 = vld [vmem:[%s1 + $0x798] sm:$0xff]
    %v274 = vld [vmem:[%s1 + $0x7a0] sm:$0xff]
    %v275 = vld [vmem:[%s1 + $0x7a8] sm:$0xff]
    %v276 = vld [vmem:[%s1 + $0x7b0] sm:$0xff]
    %v277 = vld [vmem:[%s1 + $0x7b8] sm:$0xff]
    %v278 = vld [vmem:[%s1 + $0x7c0] sm:$0xff]
    %v279 = vld [vmem:[%s1 + $0x7c8] sm:$0xff]
    %v280 = vld [vmem:[%s1 + $0x7d0] sm:$0xff]
    %v281 = vld [vmem:[%s1 + $0x7d8] sm:$0xff]
    %v282 = vld [vmem:[%s1 + $0x7e0] sm:$0xff]
    %v283 = vld [vmem:[%s1 + $0x7e8] sm:$0xff]
    %v284 = vld [vmem:[%s1 + $0x7f0] sm:$0xff]
    %v285 = vld [vmem:[%s1 + $0x7f8] sm:$0xff]
    %v286 = vld [vmem:[%s1 + $0x800] sm:$0xff]
    %v287 = vld [vmem:[%s1 + $0x808] sm:$0xff]
    %v288 = vld [vmem:[%s1 + $0x810] sm:$0xff]
    %v289 = vld [vmem:[%s1 + $0x818] sm:$0xff]
    %v290 = vld [vmem:[%s1 + $0x820] sm:$0xff]
    %v291 = vld [vmem:[%s1 + $0x828] sm:$0xff]
    %v292 = vld [vmem:[%s1 + $0x830] sm:$0xff]
    %v293 = vld [vmem:[%s1 + $0x838] sm:$0xff]
    %v294 = vld [vmem:[%s1 + $0x840] sm:$0xff]
    %v295 = vld [vmem:[%s1 + $0x848] sm:$0xff]
    %v296 = vld [vmem:[%s1 + $0x850] sm:$0xff]
    %v297 = vld [vmem:[%s1 + $0x858] sm:$0xff]
    %v298 = vld [vmem:[%s1 + $0x860] sm:$0xff]
    %v299 = vld [vmem:[%s1 + $0x868] sm:$0xff]
    %v300 = vld [vmem:[%s1 + $0x870] sm:$0xff]
    %v301 = vld [vmem:[%s1 + $0x878] sm:$0xff]
    %v302 = vld [vmem:[%s1 + $0x880] sm:$0xff]
    %v303 = vld [vmem:[%s1 + $0x888] sm:$0xff]
    %v304 = vld [vmem:[%s1 + $0x890] sm:$0xff]
    %v305 = vld [vmem:[%s1 + $0x898] sm:$0xff]
    %v306 = vld [vmem:[%s1 + $0x8a0] sm:$0xff]
    %v307 = vld [vmem:[%s1 + $0x8a8] sm:$0xff]
    %v308 = vld [vmem:[%s1 + $0x8b0] sm:$0xff]
    %v309 = vld [vmem:[%s1 + $0x8b8] sm:$0xff]
    %v310 = vld [vmem:[%s1 + $0x8c0] sm:$0xff]
    %v311 = vld [vmem:[%s1 + $0x8c8] sm:$0xff]
    %v312 = vld [vmem:[%s1 + $0x8d0] sm:$0xff]
    %v313 = vld [vmem:[%s1 + $0x8d8] sm:$0xff]
    %v314 = vld [vmem:[%s1 + $0x8e0] sm:$0xff]
    %v315 = vld [vmem:[%s1 + $0x8e8] sm:$0xff]
    %v316 = vld [vmem:[%s1 + $0x8f0] sm:$0xff]
    %v317 = vld [vmem:[%s1 + $0x8f8] sm:$0xff]
    %v318 = vld [vmem:[%s1 + $0x900] sm:$0xff]
    %v319 = vld [vmem:[%s1 + $0x908] sm:$0xff]
    %v320 = vld [vmem:[%s1 + $0x910] sm:$0xff]
    %v321 = vld [vmem:[%s1 + $0x918] sm:$0xff]
    %v322 = vld [vmem:[%s1 + $0x920] sm:$0xff]
    %v323 = vld [vmem:[%s1 + $0x928] sm:$0xff]
    %v324 = vld [vmem:[%s1 + $0x930] sm:$0xff]
    %v325 = vld [vmem:[%s1 + $0x938] sm:$0xff]
    %v326 = vld [vmem:[%s1 + $0x940] sm:$0xff]
    %v327 = vld [vmem:[%s1 + $0x948] sm:$0xff]
    %v328 = vld [vmem:[%s1 + $0x950] sm:$0xff]
    %v329 = vld [vmem:[%s1 + $0x958] sm:$0xff]
    %v330 = vld [vmem:[%s1 + $0x960] sm:$0xff]
    %v331 = vld [vmem:[%s1 + $0x968] sm:$0xff]
    %v332 = vld [vmem:[%s1 + $0x970] sm:$0xff]
    %v333 = vld [vmem:[%s1 + $0x978] sm:$0xff]
    %v334 = vld [vmem:[%s1 + $0x980] sm:$0xff]
    %v335 = vld [vmem:[%s1 + $0x988] sm:$0xff]
    %v336 = vld [vmem:[%s1 + $0x990] sm:$0xff]
    %v337 = vld [vmem:[%s1 + $0x998] sm:$0xff]
    %v338 = vld [vmem:[%s1 + $0x9a0] sm:$0xff]
    %v339 = vld [vmem:[%s1 + $0x9a8] sm:$0xff]
    %v340 = vld [vmem:[%s1 + $0x9b0] sm:$0xff]
    %v341 = vld [vmem:[%s1 + $0x9b8] sm:$0xff]
    %v342 = vld [vmem:[%s1 + $0x9c0] sm:$0xff]
    %v343 = vld [vmem:[%s1 + $0x9c8] sm:$0xff]
    %v344 = vld [vmem:[%s1 + $0x9d0] sm:$0xff]
    %v345 = vld [vmem:[%s1 + $0x9d8] sm:$0xff]
    %v346 = vld [vmem:[%s1 + $0x9e0] sm:$0xff]
    %v347 = vld [vmem:[%s1 + $0x9e8] sm:$0xff]
    %v348 = vld [vmem:[%s1 + $0x9f0] sm:$0xff]
    %v349 = vld [vmem:[%s1 + $0x9f8] sm:$0xff]
    %v350 = vld [vmem:[%s1 + $0xa00] sm:$0xff]
    %v351 = vld [vmem:[%s1 + $0xa08] sm:$0xff]
    %v352 = vld [vmem:[%s1 + $0xa10] sm:$0xff]
    %v353 = vld [vmem:[%s1 + $0xa18] sm:$0xff]
    %v354 = vld [vmem:[%s1 + $0xa20] sm:$0xff]
    %v355 = vld [vmem:[%s1 + $0xa28] sm:$0xff]
    %v356 = vld [vmem:[%s1 + $0xa30] sm:$0xff]
    %v357 = vld [vmem:[%s1 + $0xa38] sm:$0xff]
    %v358 = vld [vmem:[%s1 + $0xa40] sm:$0xff]
    %v359 = vld [vmem:[%s1 + $0xa48] sm:$0xff]
    %v360 = vld [vmem:[%s1 + $0xa50] sm:$0xff]
    %v361 = vld [vmem:[%s1 + $0xa58] sm:$0xff]
    %v362 = vld [vmem:[%s1 + $0xa60] sm:$0xff]
    %v363 = vld [vmem:[%s1 + $0xa68] sm:$0xff]
    %v364 = vld [vmem:[%s1 + $0xa70] sm:$0xff]
    %v365 = vld [vmem:[%s1 + $0xa78] sm:$0xff]
    %v366 = vld [vmem:[%s1 + $0xa80] sm:$0xff]
    %v367 = vld [vmem:[%s1 + $0xa88] sm:$0xff]
    %v368 = vld [vmem:[%s1 + $0xa90] sm:$0xff]
    %v369 = vld [vmem:[%s1 + $0xa98] sm:$0xff]
    %v370 = vld [vmem:[%s1 + $0xaa0] sm:$0xff]
    %v371 = vld [vmem:[%s1 + $0xaa8] sm:$0xff]
    %v372 = vld [vmem:[%s1 + $0xab0] sm:$0xff]
    %v373 = vld [vmem:[%s1 + $0xab8] sm:$0xff]
    %v374 = vld [vmem:[%s1 + $0xac0] sm:$0xff]
    %v375 = vld [vmem:[%s1 + $0xac8] sm:$0xff]
    %v376 = vld [vmem:[%s1 + $0xad0] sm:$0xff]
    %v377 = vld [vmem:[%s1 + $0xad8] sm:$0xff]
    %v378 = vld [vmem:[%s1 + $0xae0] sm:$0xff]
    %v379 = vld [vmem:[%s1 + $0xae8] sm:$0xff]
    %v380 = vld [vmem:[%s1 + $0xaf0] sm:$0xff]
    %v381 = vld [vmem:[%s1 + $0xaf8] sm:$0xff]
    %v382 = vld [vmem:[%s1 + $0xb00] sm:$0xff]
    %v383 = vld [vmem:[%s1 + $0xb08] sm:$0xff]
    %v384 = vld [vmem:[%s1 + $0xb10] sm:$0xff]
    %v385 = vld [vmem:[%s1 + $0xb18] sm:$0xff]
    %v386 = vld [vmem:[%s1 + $0xb20] sm:$0xff]
    %v387 = vld [vmem:[%s1 + $0xb28] sm:$0xff]
    %v388 = vld [vmem:[%s1 + $0xb30] sm:$0xff]
    %v389 = vld [vmem:[%s1 + $0xb38] sm:$0xff]
    %v390 = vld [vmem:[%s1 + $0xb40] sm:$0xff]
    %v391 = vld [vmem:[%s1 + $0xb48] sm:$0xff]
    %v392 = vld [vmem:[%s1 + $0xb50] sm:$0xff]
    %v393 = vld [vmem:[%s1 + $0xb58] sm:$0xff]
    %v394 = vld [vmem:[%s1 + $0xb60] sm:$0xff]
    %v395 = vld [vmem:[%s1 + $0xb68] sm:$0xff]
    %v396 = vld [vmem:[%s1 + $0xb70] sm:$0xff]
    %v397 = vld [vmem:[%s1 + $0xb78] sm:$0xff]
    %v398 = vld [vmem:[%s1 + $0xb80] sm:$0xff]
    %v399 = vld [vmem:[%s1 + $0xb88] sm:$0xff]
    %v400 = vld [vmem:[%s1 + $0xb90] sm:$0xff]
    %v401 = vld [vmem:[%s1 + $0xb98] sm:$0xff]
    %v402 = vld [vmem:[%s1 + $0xba0] sm:$0xff]
    %v403 = vld [vmem:[%s1 + $0xba8] sm:$0xff]
    %v404 = vld [vmem:[%s1 + $0xbb0] sm:$0xff]
    %v405 = vld [vmem:[%s1 + $0xbb8] sm:$0xff]
    %v406 = vld [vmem:[%s1 + $0xbc0] sm:$0xff]
    %v407 = vld [vmem:[%s1 + $0xbc8] sm:$0xff]
    %v408 = vld [vmem:[%s1 + $0xbd0] sm:$0xff]
    %v409 = vld [vmem:[%s1 + $0xbd8] sm:$0xff]
    %v410 = vld [vmem:[%s1 + $0xbe0] sm:$0xff]
    %v411 = vld [vmem:[%s1 + $0xbe8] sm:$0xff]
    %v412 = vld [vmem:[%s1 + $0xbf0] sm:$0xff]
    %v413 = vld [vmem:[%s1 + $0xbf8] sm:$0xff]
    %v414 = vld [vmem:[%s1 + $0xc00] sm:$0xff]
    %v415 = vld [vmem:[%s1 + $0xc08] sm:$0xff]
    %v416 = vld [vmem:[%s1 + $0xc10] sm:$0xff]
    %v417 = vld [vmem:[%s1 + $0xc18] sm:$0xff]
    %v418 = vld [vmem:[%s1 + $0xc20] sm:$0xff]
    %v419 = vld [vmem:[%s1 + $0xc28] sm:$0xff]
    %v420 = vld [vmem:[%s1 + $0xc30] sm:$0xff]
    %v421 = vld [vmem:[%s1 + $0xc38] sm:$0xff]
    %v422 = vld [vmem:[%s1 + $0xc40] sm:$0xff]
    %v423 = vld [vmem:[%s1 + $0xc48] sm:$0xff]
    %v424 = vld [vmem:[%s1 + $0xc50] sm:$0xff]
    %v425 = vld [vmem:[%s1 + $0xc58] sm:$0xff]
    %v426 = vld [vmem:[%s1 + $0xc60] sm:$0xff]
    %v427 = vld [vmem:[%s1 + $0xc68] sm:$0xff]
    %v428 = vld [vmem:[%s1 + $0xc70] sm:$0xff]
    %v429 = vld [vmem:[%s1 + $0xc78] sm:$0xff]
    %v430 = vld [vmem:[%s1 + $0xc80] sm:$0xff]
    %v431 = vld [vmem:[%s1 + $0xc88] sm:$0xff]
    %v432 = vld [vmem:[%s1 + $0xc90] sm:$0xff]
    %v433 = vld [vmem:[%s1 + $0xc98] sm:$0xff]
    %v434 = vld [vmem:[%s1 + $0xca0] sm:$0xff]
    %v435 = vld [vmem:[%s1 + $0xca8] sm:$0xff]
    %v436 = vld [vmem:[%s1 + $0xcb0] sm:$0xff]
    %v437 = vld [vmem:[%s1 + $0xcb8] sm:$0xff]
    %v438 = vld [vmem:[%s1 + $0xcc0] sm:$0xff]
    %v439 = vld [vmem:[%s1 + $0xcc8] sm:$0xff]
    %v440 = vld [vmem:[%s1 + $0xcd0] sm:$0xff]
    %v441 = vld [vmem:[%s1 + $0xcd8] sm:$0xff]
    %v442 = vld [vmem:[%s1 + $0xce0] sm:$0xff]
    %v443 = vld [vmem:[%s1 + $0xce8] sm:$0xff]
    %v444 = vld [vmem:[%s1 + $0xcf0] sm:$0xff]
    %v445 = vld [vmem:[%s1 + $0xcf8] sm:$0xff]
    %v446 = vld [vmem:[%s1 + $0xd00] sm:$0xff]
    %v447 = vld [vmem:[%s1 + $0xd08] sm:$0xff]
    %v448 = vld [vmem:[%s1 + $0xd10] sm:$0xff]
    %v449 = vld [vmem:[%s1 + $0xd18] sm:$0xff]
    %v450 = vld [vmem:[%s1 + $0xd20] sm:$0xff]
    %v451 = vld [vmem:[%s1 + $0xd28] sm:$0xff]
    %v452 = vld [vmem:[%s1 + $0xd30] sm:$0xff]
    %v453 = vld [vmem:[%s1 + $0xd38] sm:$0xff]
    %v454 = vld [vmem:[%s1 + $0xd40] sm:$0xff]
    %v455 = vld [vmem:[%s1 + $0xd48] sm:$0xff]
    %v456 = vld [vmem:[%s1 + $0xd50] sm:$0xff]
    %v457 = vld [vmem:[%s1 + $0xd58] sm:$0xff]
    %v458 = vld [vmem:[%s1 + $0xd60] sm:$0xff]
    %v459 = vld [vmem:[%s1 + $0xd68] sm:$0xff]
    %v460 = vld [vmem:[%s1 + $0xd70] sm:$0xff]
    %v461 = vld [vmem:[%s1 + $0xd78] sm:$0xff]
    %v462 = vld [vmem:[%s1 + $0xd80] sm:$0xff]
    %v463 = vld [vmem:[%s1 + $0xd88] sm:$0xff]
    %v464 = vld [vmem:[%s1 + $0xd90] sm:$0xff]
    %v465 = vld [vmem:[%s1 + $0xd98] sm:$0xff]
    %v466 = vld [vmem:[%s1 + $0xda0] sm:$0xff]
    %v467 = vld [vmem:[%s1 + $0xda8] sm:$0xff]
    %v468 = vld [vmem:[%s1 + $0xdb0] sm:$0xff]
    %v469 = vld [vmem:[%s1 + $0xdb8] sm:$0xff]
    %v470 = vld [vmem:[%s1 + $0xdc0] sm:$0xff]
    %v471 = vld [vmem:[%s1 + $0xdc8] sm:$0xff]
    %v472 = vld [vmem:[%s1 + $0xdd0] sm:$0xff]
    %v473 = vld [vmem:[%s1 + $0xdd8] sm:$0xff]
    %v474 = vld [vmem:[%s1 + $0xde0] sm:$0xff]
    %v475 = vld [vmem:[%s1 + $0xde8] sm:$0xff]
    %v476 = vld [vmem:[%s1 + $0xdf0] sm:$0xff]
    %v477 = vld [vmem:[%s1 + $0xdf8] sm:$0xff]
    %v478 = vld [vmem:[%s1 + $0xe00] sm:$0xff]
    %v479 = vld [vmem:[%s1 + $0xe08] sm:$0xff]
    %v480 = vld [vmem:[%s1 + $0xe10] sm:$0xff]
    %v481 = vld [vmem:[%s1 + $0xe18] sm:$0xff]
    %v482 = vld [vmem:[%s1 + $0xe20] sm:$0xff]
    %v483 = vld [vmem:[%s1 + $0xe28] sm:$0xff]
    %v484 = vld [vmem:[%s1 + $0xe30] sm:$0xff]
    %v485 = vld [vmem:[%s1 + $0xe38] sm:$0xff]
    %v486 = vld [vmem:[%s1 + $0xe40] sm:$0xff]
    %v487 = vld [vmem:[%s1 + $0xe48] sm:$0xff]
    %v488 = vld [vmem:[%s1 + $0xe50] sm:$0xff]
    %v489 = vld [vmem:[%s1 + $0xe58] sm:$0xff]
    %v490 = vld [vmem:[%s1 + $0xe60] sm:$0xff]
    %v491 = vld [vmem:[%s1 + $0xe68] sm:$0xff]
    %v492 = vld [vmem:[%s1 + $0xe70] sm:$0xff]
    %v493 = vld [vmem:[%s1 + $0xe78] sm:$0xff]
    %v494 = vld [vmem:[%s1 + $0xe80] sm:$0xff]
    %v495 = vld [vmem:[%s1 + $0xe88] sm:$0xff]
    %v496 = vld [vmem:[%s1 + $0xe90] sm:$0xff]
    %v497 = vld [vmem:[%s1 + $0xe98] sm:$0xff]
    %v498 = vld [vmem:[%s1 + $0xea0] sm:$0xff]
    %v499 = vld [vmem:[%s1 + $0xea8] sm:$0xff]
    %v500 = vld [vmem:[%s1 + $0xeb0] sm:$0xff]
    %v501 = vld [vmem:[%s1 + $0xeb8] sm:$0xff]
    %v502 = vld [vmem:[%s1 + $0xec0] sm:$0xff]
    %v503 = vld [vmem:[%s1 + $0xec8] sm:$0xff]
    %v504 = vld [vmem:[%s1 + $0xed0] sm:$0xff]
    %v505 = vld [vmem:[%s1 + $0xed8] sm:$0xff]
    %v506 = vld [vmem:[%s1 + $0xee0] sm:$0xff]
    %v507 = vld [vmem:[%s1 + $0xee8] sm:$0xff]
    %v508 = vld [vmem:[%s1 + $0xef0] sm:$0xff]
    %v509 = vld [vmem:[%s1 + $0xef8] sm:$0xff]
    %v510 = vld [vmem:[%s1 + $0xf00] sm:$0xff]
    %v511 = vld [vmem:[%s1 + $0xf08] sm:$0xff]
    %v512 = vld [vmem:[%s1 + $0xf10] sm:$0xff]
    %v513 = vld [vmem:[%s1 + $0xf18] sm:$0xff]
    %v514 = vld [vmem:[%s1 + $0xf20] sm:$0xff]
    %v515 = vld [vmem:[%s1 + $0xf28] sm:$0xff]
    %v516 = vld [vmem:[%s1 + $0xf30] sm:$0xff]
    %v517 = vld [vmem:[%s1 + $0xf38] sm:$0xff]
    %v518 = vld [vmem:[%s1 + $0xf40] sm:$0xff]
    %v519 = vld [vmem:[%s1 + $0xf48] sm:$0xff]
    %v520 = vld [vmem:[%s1 + $0xf50] sm:$0xff]
    %v521 = vld [vmem:[%s1 + $0xf58] sm:$0xff]
    %v522 = vld [vmem:[%s1 + $0xf60] sm:$0xff]
    %v523 = vld [vmem:[%s1 + $0xf68] sm:$0xff]
    %v524 = vld [vmem:[%s1 + $0xf70] sm:$0xff]
    %v525 = vld [vmem:[%s1 + $0xf78] sm:$0xff]
    %v526 = vld [vmem:[%s1 + $0xf80] sm:$0xff]
    %v527 = vld [vmem:[%s1 + $0xf88] sm:$0xff]
    %v528 = vld [vmem:[%s1 + $0xf90] sm:$0xff]
    %v529 = vld [vmem:[%s1 + $0xf98] sm:$0xff]
    %v530 = vld [vmem:[%s1 + $0xfa0] sm:$0xff]
    %v531 = vld [vmem:[%s1 + $0xfa8] sm:$0xff]
    %v532 = vld [vmem:[%s1 + $0xfb0] sm:$0xff]
    %v533 = vld [vmem:[%s1 + $0xfb8] sm:$0xff]
    %v534 = vld [vmem:[%s1 + $0xfc0] sm:$0xff]
    %v535 = vld [vmem:[%s1 + $0xfc8] sm:$0xff]
    %v536 = vld [vmem:[%s1 + $0xfd0] sm:$0xff]
    %v537 = vld [vmem:[%s1 + $0xfd8] sm:$0xff]
    %v538 = vld [vmem:[%s1 + $0xfe0] sm:$0xff]
    %v539 = vld [vmem:[%s1 + $0xfe8] sm:$0xff]
    %v540 = vld [vmem:[%s1 + $0xff0] sm:$0xff]
    %v541 = vld [vmem:[%s1 + $0xff8] sm:$0xff]
    %v542 = vld [vmem:[%s1 + $0x1000] sm:$0xff]
    %v543 = vld [vmem:[%s1 + $0x1008] sm:$0xff]
    %v544 = vld [vmem:[%s1 + $0x1010] sm:$0xff]
    %v545 = vld [vmem:[%s1 + $0x1018] sm:$0xff]
    %v546 = vld [vmem:[%s1 + $0x1020] sm:$0xff]
    %v547 = vld [vmem:[%s1 + $0x1028] sm:$0xff]
    %v548 = vld [vmem:[%s1 + $0x1030] sm:$0xff]
    %v549 = vld [vmem:[%s1 + $0x1038] sm:$0xff]
    %v550 = vld [vmem:[%s1 + $0x1040] sm:$0xff]
    %v551 = vld [vmem:[%s1 + $0x1048] sm:$0xff]
    %v552 = vld [vmem:[%s1 + $0x1050] sm:$0xff]
    %v553 = vld [vmem:[%s1 + $0x1058] sm:$0xff]
    %v554 = vld [vmem:[%s1 + $0x1060] sm:$0xff]
    %v555 = vld [vmem:[%s1 + $0x1068] sm:$0xff]
    %v556 = vld [vmem:[%s1 + $0x1070] sm:$0xff]
    %v557 = vld [vmem:[%s1 + $0x1078] sm:$0xff]
    %v558 = vld [vmem:[%s1 + $0x1080] sm:$0xff]
    %v559 = vld [vmem:[%s1 + $0x1088] sm:$0xff]
    %v560 = vld [vmem:[%s1 + $0x1090] sm:$0xff]
    %v561 = vld [vmem:[%s1 + $0x1098] sm:$0xff]
    %v562 = vld [vmem:[%s1 + $0x10a0] sm:$0xff]
    %v563 = vld [vmem:[%s1 + $0x10a8] sm:$0xff]
    %v564 = vld [vmem:[%s1 + $0x10b0] sm:$0xff]
    %v565 = vld [vmem:[%s1 + $0x10b8] sm:$0xff]
    %v566 = vld [vmem:[%s1 + $0x10c0] sm:$0xff]
    %v567 = vld [vmem:[%s1 + $0x10c8] sm:$0xff]
    %v568 = vld [vmem:[%s1 + $0x10d0] sm:$0xff]
    %v569 = vld [vmem:[%s1 + $0x10d8] sm:$0xff]
    %v570 = vld [vmem:[%s1 + $0x10e0] sm:$0xff]
    %v571 = vld [vmem:[%s1 + $0x10e8] sm:$0xff]
    %v572 = vld [vmem:[%s1 + $0x10f0] sm:$0xff]
    %v573 = vld [vmem:[%s1 + $0x10f8] sm:$0xff]
    %v574 = vld [vmem:[%s1 + $0x1100] sm:$0xff]
    %v575 = vld [vmem:[%s1 + $0x1108] sm:$0xff]
    %v576 = vld [vmem:[%s1 + $0x1110] sm:$0xff]
    %v577 = vld [vmem:[%s1 + $0x1118] sm:$0xff]
    %v578 = vld [vmem:[%s1 + $0x1120] sm:$0xff]
    %v579 = vld [vmem:[%s1 + $0x1128] sm:$0xff]
    %v580 = vld [vmem:[%s1 + $0x1130] sm:$0xff]
    %v581 = vld [vmem:[%s1 + $0x1138] sm:$0xff]
    %v582 = vld [vmem:[%s1 + $0x1140] sm:$0xff]
    %v583 = vld [vmem:[%s1 + $0x1148] sm:$0xff]
    %v584 = vld [vmem:[%s1 + $0x1150] sm:$0xff]
    %v585 = vld [vmem:[%s1 + $0x1158] sm:$0xff]
    %v586 = vld [vmem:[%s1 + $0x1160] sm:$0xff]
    %v587 = vld [vmem:[%s1 + $0x1168] sm:$0xff]
    %v588 = vld [vmem:[%s1 + $0x1170] sm:$0xff]
    %v589 = vld [vmem:[%s1 + $0x1178] sm:$0xff]
    %v590 = vld [vmem:[%s1 + $0x1180] sm:$0xff]
    %v591 = vld [vmem:[%s1 + $0x1188] sm:$0xff]
    %v592 = vld [vmem:[%s1 + $0x1190] sm:$0xf]
    %v593 = vld [vmem:[%s2] sm:$0x1]
    %v595 = vperm.slane %v593, 0
    %606 = vst [vmem:[#allocation1] ss:$4 sm:$0xff] %v21
    %s607 = scalar_lea.vmem [#allocation1], 32
    %608 = vst [vmem:[%s607] ss:$4 sm:$0xff] %v22
    %v609 = vld.sshfl [vmem:[#allocation1] sm:$0xff pattern:$0x73625140]
    %v610 = vld.sshfl [vmem:[#allocation1 + $0x8] sm:$0xff pattern:$0x73625140]
    %v611 = vld.sshfl [vmem:[#allocation1 + $0x10] sm:$0xff pattern:$0x73625140]
    %v612 = vld.sshfl [vmem:[#allocation1 + $0x18] sm:$0xff pattern:$0x73625140]
    %v613 = vld.sshfl [vmem:[#allocation1 + $0x20] sm:$0xff pattern:$0x73625140]
    %v614 = vld.sshfl [vmem:[#allocation1 + $0x28] sm:$0xff pattern:$0x73625140]
    %v615 = vld.sshfl [vmem:[#allocation1 + $0x30] sm:$0xff pattern:$0x73625140]
    %v616 = vld.sshfl [vmem:[#allocation1 + $0x38] sm:$0xff pattern:$0x73625140]
    %617 = vst [vmem:[#allocation1] ss:$4 sm:$0xff] %v23
    %618 = vst [vmem:[%s607] ss:$4 sm:$0xff] %v24
    %v619 = vld.sshfl [vmem:[#allocation1] sm:$0xff pattern:$0x73625140]
    %v620 = vld.sshfl [vmem:[#allocation1 + $0x8] sm:$0xff pattern:$0x73625140]
    %v621 = vld.sshfl [vmem:[#allocation1 + $0x10] sm:$0xff pattern:$0x73625140]
    %v622 = vld.sshfl [vmem:[#allocation1 + $0x18] sm:$0xff pattern:$0x73625140]
    %v623 = vld.sshfl [vmem:[#allocation1 + $0x20] sm:$0xff pattern:$0x73625140]
    %v624 = vld.sshfl [vmem:[#allocation1 + $0x28] sm:$0xff pattern:$0x73625140]
    %v625 = vld.sshfl [vmem:[#allocation1 + $0x30] sm:$0xff pattern:$0x73625140]
    %v626 = vld.sshfl [vmem:[#allocation1 + $0x38] sm:$0xff pattern:$0x73625140]
    %627 = vst [vmem:[#allocation1] ss:$4 sm:$0xff] %v25
    %628 = vst [vmem:[%s607] ss:$4 sm:$0xff] %v26
    %v629 = vld.sshfl [vmem:[#allocation1] sm:$0xff pattern:$0x73625140]
    %v630 = vld.sshfl [vmem:[#allocation1 + $0x8] sm:$0xff pattern:$0x73625140]
    %v631 = vld.sshfl [vmem:[#allocation1 + $0x10] sm:$0xff pattern:$0x73625140]
    %v632 = vld.sshfl [vmem:[#allocation1 + $0x18] sm:$0xff pattern:$0x73625140]
    %v633 = vld.sshfl [vmem:[#allocation1 + $0x20] sm:$0xff pattern:$0x73625140]
    %v634 = vld.sshfl [vmem:[#allocation1 + $0x28] sm:$0xff pattern:$0x73625140]
    %v635 = vld.sshfl [vmem:[#allocation1 + $0x30] sm:$0xff pattern:$0x73625140]
    %v636 = vld.sshfl [vmem:[#allocation1 + $0x38] sm:$0xff pattern:$0x73625140]
    %637 = vst [vmem:[#allocation1] ss:$4 sm:$0xff] %v27
    %638 = vst [vmem:[%s607] ss:$4 sm:$0xff] %v28
    %v639 = vld.sshfl [vmem:[#allocation1] sm:$0xff pattern:$0x73625140]
    %v640 = vld.sshfl [vmem:[#allocation1 + $0x8] sm:$0xff pattern:$0x73625140]
    %v641 = vld.sshfl [vmem:[#allocation1 + $0x10] sm:$0xff pattern:$0x73625140]
    %v642 = vld.sshfl [vmem:[#allocation1 + $0x18] sm:$0xff pattern:$0x73625140]
    %v643 = vld.sshfl [vmem:[#allocation1 + $0x20] sm:$0xff pattern:$0x73625140]
    %v644 = vld.sshfl [vmem:[#allocation1 + $0x28] sm:$0xff pattern:$0x73625140]
    %v645 = vld.sshfl [vmem:[#allocation1 + $0x30] sm:$0xff pattern:$0x73625140]
    %v646 = vld.sshfl [vmem:[#allocation1 + $0x38] sm:$0xff pattern:$0x73625140]
    %647 = vst [vmem:[#allocation1] ss:$4 sm:$0xff] %v29
    %v648 = vld.sshfl [vmem:[#allocation1] sm:$0xff pattern:$0x73625140]
    %v649 = vld.sshfl [vmem:[#allocation1 + $0x8] sm:$0xff pattern:$0x73625140]
    %v650 = vld.sshfl [vmem:[#allocation1 + $0x10] sm:$0xff pattern:$0x73625140]
    %v651 = vld.sshfl [vmem:[#allocation1 + $0x18] sm:$0xff pattern:$0x73625140]
    %vm687 = vcmask 162816
    %v688 = vsel %vm687, %v651, 0
    %vm690 = vcmask 1043456
    %v692 = vsel %vm690, %v592, 0
    %694 = vmatpush.msra.mxu0 %v45
    %695 = vmatpush.msra.mxu0 %v44
    %696 = vmatpush.msra.mxu0 %v43
    %697 = vmatpush.msra.mxu0 %v42
    %698 = vmatpush.msra.mxu0 %v41
    %699 = vmatpush.msra.mxu0 %v40
    %700 = vmatpush.msra.mxu0 %v39
    %701 = vmatpush.msra.mxu0 %v38
    %702 = vmatpush.msra.mxu0 %v37
    %703 = vmatpush.msra.mxu0 %v36
    %704 = vmatpush.msra.mxu0 %v35
    %705 = vmatpush.msra.mxu0 %v34
    %706 = vmatpush.msra.mxu0 %v33
    %707 = vmatpush.msra.mxu0 %v32
    %708 = vmatpush.msra.mxu0 %v31
    %709 = vmatpush.msra.mxu0 %v30
    %710 = vmatmul.f32.gmra.mxu0 %v609
    %v711 = vpop.f32.mrf.mxu0
    %v712 = vadd.f32 %v595, %v711
    %713 = vdwg.mxu0
    %714 = vmatpush.msra.mxu0 %v61
    %715 = vmatpush.msra.mxu0 %v60
    %716 = vmatpush.msra.mxu0 %v59
    %717 = vmatpush.msra.mxu0 %v58
    %718 = vmatpush.msra.mxu0 %v57
    %719 = vmatpush.msra.mxu0 %v56
    %720 = vmatpush.msra.mxu0 %v55
    %721 = vmatpush.msra.mxu0 %v54
    %722 = vmatpush.msra.mxu0 %v53
    %723 = vmatpush.msra.mxu0 %v52
    %724 = vmatpush.msra.mxu0 %v51
    %725 = vmatpush.msra.mxu0 %v50
    %726 = vmatpush.msra.mxu0 %v49
    %727 = vmatpush.msra.mxu0 %v48
    %728 = vmatpush.msra.mxu0 %v47
    %729 = vmatpush.msra.mxu0 %v46
    %730 = vmatmul.f32.gmra.mxu0 %v610
    %v731 = vpop.f32.mrf.mxu0
    %v732 = vadd.f32 %v712, %v731
    %733 = vdwg.mxu0
    %734 = vmatpush.msra.mxu0 %v77
    %735 = vmatpush.msra.mxu0 %v76
    %736 = vmatpush.msra.mxu0 %v75
    %737 = vmatpush.msra.mxu0 %v74
    %738 = vmatpush.msra.mxu0 %v73
    %739 = vmatpush.msra.mxu0 %v72
    %740 = vmatpush.msra.mxu0 %v71
    %741 = vmatpush.msra.mxu0 %v70
    %742 = vmatpush.msra.mxu0 %v69
    %743 = vmatpush.msra.mxu0 %v68
    %744 = vmatpush.msra.mxu0 %v67
    %745 = vmatpush.msra.mxu0 %v66
    %746 = vmatpush.msra.mxu0 %v65
    %747 = vmatpush.msra.mxu0 %v64
    %748 = vmatpush.msra.mxu0 %v63
    %749 = vmatpush.msra.mxu0 %v62
    %750 = vmatmul.f32.gmra.mxu0 %v611
    %v751 = vpop.f32.mrf.mxu0
    %v752 = vadd.f32 %v732, %v751
    %753 = vdwg.mxu0
    %754 = vmatpush.msra.mxu0 %v93
    %755 = vmatpush.msra.mxu0 %v92
    %756 = vmatpush.msra.mxu0 %v91
    %757 = vmatpush.msra.mxu0 %v90
    %758 = vmatpush.msra.mxu0 %v89
    %759 = vmatpush.msra.mxu0 %v88
    %760 = vmatpush.msra.mxu0 %v87
    %761 = vmatpush.msra.mxu0 %v86
    %762 = vmatpush.msra.mxu0 %v85
    %763 = vmatpush.msra.mxu0 %v84
    %764 = vmatpush.msra.mxu0 %v83
    %765 = vmatpush.msra.mxu0 %v82
    %766 = vmatpush.msra.mxu0 %v81
    %767 = vmatpush.msra.mxu0 %v80
    %768 = vmatpush.msra.mxu0 %v79
    %769 = vmatpush.msra.mxu0 %v78
    %770 = vmatmul.f32.gmra.mxu0 %v612
    %v771 = vpop.f32.mrf.mxu0
    %v772 = vadd.f32 %v752, %v771
    %773 = vdwg.mxu0
    %774 = vmatpush.msra.mxu0 %v109
    %775 = vmatpush.msra.mxu0 %v108
    %776 = vmatpush.msra.mxu0 %v107
    %777 = vmatpush.msra.mxu0 %v106
    %778 = vmatpush.msra.mxu0 %v105
    %779 = vmatpush.msra.mxu0 %v104
    %780 = vmatpush.msra.mxu0 %v103
    %781 = vmatpush.msra.mxu0 %v102
    %782 = vmatpush.msra.mxu0 %v101
    %783 = vmatpush.msra.mxu0 %v100
    %784 = vmatpush.msra.mxu0 %v99
    %785 = vmatpush.msra.mxu0 %v98
    %786 = vmatpush.msra.mxu0 %v97
    %787 = vmatpush.msra.mxu0 %v96
    %788 = vmatpush.msra.mxu0 %v95
    %789 = vmatpush.msra.mxu0 %v94
    %790 = vmatmul.f32.gmra.mxu0 %v613
    %v791 = vpop.f32.mrf.mxu0
    %v792 = vadd.f32 %v772, %v791
    %793 = vdwg.mxu0
    %794 = vmatpush.msra.mxu0 %v125
    %795 = vmatpush.msra.mxu0 %v124
    %796 = vmatpush.msra.mxu0 %v123
    %797 = vmatpush.msra.mxu0 %v122
    %798 = vmatpush.msra.mxu0 %v121
    %799 = vmatpush.msra.mxu0 %v120
    %800 = vmatpush.msra.mxu0 %v119
    %801 = vmatpush.msra.mxu0 %v118
    %802 = vmatpush.msra.mxu0 %v117
    %803 = vmatpush.msra.mxu0 %v116
    %804 = vmatpush.msra.mxu0 %v115
    %805 = vmatpush.msra.mxu0 %v114
    %806 = vmatpush.msra.mxu0 %v113
    %807 = vmatpush.msra.mxu0 %v112
    %808 = vmatpush.msra.mxu0 %v111
    %809 = vmatpush.msra.mxu0 %v110
    %810 = vmatmul.f32.gmra.mxu0 %v614
    %v811 = vpop.f32.mrf.mxu0
    %v812 = vadd.f32 %v792, %v811
    %813 = vdwg.mxu0
    %814 = vmatpush.msra.mxu0 %v141
    %815 = vmatpush.msra.mxu0 %v140
    %816 = vmatpush.msra.mxu0 %v139
    %817 = vmatpush.msra.mxu0 %v138
    %818 = vmatpush.msra.mxu0 %v137
    %819 = vmatpush.msra.mxu0 %v136
    %820 = vmatpush.msra.mxu0 %v135
    %821 = vmatpush.msra.mxu0 %v134
    %822 = vmatpush.msra.mxu0 %v133
    %823 = vmatpush.msra.mxu0 %v132
    %824 = vmatpush.msra.mxu0 %v131
    %825 = vmatpush.msra.mxu0 %v130
    %826 = vmatpush.msra.mxu0 %v129
    %827 = vmatpush.msra.mxu0 %v128
    %828 = vmatpush.msra.mxu0 %v127
    %829 = vmatpush.msra.mxu0 %v126
    %830 = vmatmul.f32.gmra.mxu0 %v615
    %v831 = vpop.f32.mrf.mxu0
    %v832 = vadd.f32 %v812, %v831
    %833 = vdwg.mxu0
    %834 = vmatpush.msra.mxu0 %v157
    %835 = vmatpush.msra.mxu0 %v156
    %836 = vmatpush.msra.mxu0 %v155
    %837 = vmatpush.msra.mxu0 %v154
    %838 = vmatpush.msra.mxu0 %v153
    %839 = vmatpush.msra.mxu0 %v152
    %840 = vmatpush.msra.mxu0 %v151
    %841 = vmatpush.msra.mxu0 %v150
    %842 = vmatpush.msra.mxu0 %v149
    %843 = vmatpush.msra.mxu0 %v148
    %844 = vmatpush.msra.mxu0 %v147
    %845 = vmatpush.msra.mxu0 %v146
    %846 = vmatpush.msra.mxu0 %v145
    %847 = vmatpush.msra.mxu0 %v144
    %848 = vmatpush.msra.mxu0 %v143
    %849 = vmatpush.msra.mxu0 %v142
    %850 = vmatmul.f32.gmra.mxu0 %v616
    %v851 = vpop.f32.mrf.mxu0
    %v852 = vadd.f32 %v832, %v851
    %853 = vdwg.mxu0
    %854 = vmatpush.msra.mxu0 %v173
    %855 = vmatpush.msra.mxu0 %v172
    %856 = vmatpush.msra.mxu0 %v171
    %857 = vmatpush.msra.mxu0 %v170
    %858 = vmatpush.msra.mxu0 %v169
    %859 = vmatpush.msra.mxu0 %v168
    %860 = vmatpush.msra.mxu0 %v167
    %861 = vmatpush.msra.mxu0 %v166
    %862 = vmatpush.msra.mxu0 %v165
    %863 = vmatpush.msra.mxu0 %v164
    %864 = vmatpush.msra.mxu0 %v163
    %865 = vmatpush.msra.mxu0 %v162
    %866 = vmatpush.msra.mxu0 %v161
    %867 = vmatpush.msra.mxu0 %v160
    %868 = vmatpush.msra.mxu0 %v159
    %869 = vmatpush.msra.mxu0 %v158
    %870 = vmatmul.f32.gmra.mxu0 %v619
    %v871 = vpop.f32.mrf.mxu0
    %v872 = vadd.f32 %v852, %v871
    %873 = vdwg.mxu0
    %874 = vmatpush.msra.mxu0 %v189
    %875 = vmatpush.msra.mxu0 %v188
    %876 = vmatpush.msra.mxu0 %v187
    %877 = vmatpush.msra.mxu0 %v186
    %878 = vmatpush.msra.mxu0 %v185
    %879 = vmatpush.msra.mxu0 %v184
    %880 = vmatpush.msra.mxu0 %v183
    %881 = vmatpush.msra.mxu0 %v182
    %882 = vmatpush.msra.mxu0 %v181
    %883 = vmatpush.msra.mxu0 %v180
    %884 = vmatpush.msra.mxu0 %v179
    %885 = vmatpush.msra.mxu0 %v178
    %886 = vmatpush.msra.mxu0 %v177
    %887 = vmatpush.msra.mxu0 %v176
    %888 = vmatpush.msra.mxu0 %v175
    %889 = vmatpush.msra.mxu0 %v174
    %890 = vmatmul.f32.gmra.mxu0 %v620
    %v891 = vpop.f32.mrf.mxu0
    %v892 = vadd.f32 %v872, %v891
    %893 = vdwg.mxu0
    %894 = vmatpush.msra.mxu0 %v205
    %895 = vmatpush.msra.mxu0 %v204
    %896 = vmatpush.msra.mxu0 %v203
    %897 = vmatpush.msra.mxu0 %v202
    %898 = vmatpush.msra.mxu0 %v201
    %899 = vmatpush.msra.mxu0 %v200
    %900 = vmatpush.msra.mxu0 %v199
    %901 = vmatpush.msra.mxu0 %v198
    %902 = vmatpush.msra.mxu0 %v197
    %903 = vmatpush.msra.mxu0 %v196
    %904 = vmatpush.msra.mxu0 %v195
    %905 = vmatpush.msra.mxu0 %v194
    %906 = vmatpush.msra.mxu0 %v193
    %907 = vmatpush.msra.mxu0 %v192
    %908 = vmatpush.msra.mxu0 %v191
    %909 = vmatpush.msra.mxu0 %v190
    %910 = vmatmul.f32.gmra.mxu0 %v621
    %v911 = vpop.f32.mrf.mxu0
    %v912 = vadd.f32 %v892, %v911
    %913 = vdwg.mxu0
    %914 = vmatpush.msra.mxu0 %v221
    %915 = vmatpush.msra.mxu0 %v220
    %916 = vmatpush.msra.mxu0 %v219
    %917 = vmatpush.msra.mxu0 %v218
    %918 = vmatpush.msra.mxu0 %v217
    %919 = vmatpush.msra.mxu0 %v216
    %920 = vmatpush.msra.mxu0 %v215
    %921 = vmatpush.msra.mxu0 %v214
    %922 = vmatpush.msra.mxu0 %v213
    %923 = vmatpush.msra.mxu0 %v212
    %924 = vmatpush.msra.mxu0 %v211
    %925 = vmatpush.msra.mxu0 %v210
    %926 = vmatpush.msra.mxu0 %v209
    %927 = vmatpush.msra.mxu0 %v208
    %928 = vmatpush.msra.mxu0 %v207
    %929 = vmatpush.msra.mxu0 %v206
    %930 = vmatmul.f32.gmra.mxu0 %v622
    %v931 = vpop.f32.mrf.mxu0
    %v932 = vadd.f32 %v912, %v931
    %933 = vdwg.mxu0
    %934 = vmatpush.msra.mxu0 %v237
    %935 = vmatpush.msra.mxu0 %v236
    %936 = vmatpush.msra.mxu0 %v235
    %937 = vmatpush.msra.mxu0 %v234
    %938 = vmatpush.msra.mxu0 %v233
    %939 = vmatpush.msra.mxu0 %v232
    %940 = vmatpush.msra.mxu0 %v231
    %941 = vmatpush.msra.mxu0 %v230
    %942 = vmatpush.msra.mxu0 %v229
    %943 = vmatpush.msra.mxu0 %v228
    %944 = vmatpush.msra.mxu0 %v227
    %945 = vmatpush.msra.mxu0 %v226
    %946 = vmatpush.msra.mxu0 %v225
    %947 = vmatpush.msra.mxu0 %v224
    %948 = vmatpush.msra.mxu0 %v223
    %949 = vmatpush.msra.mxu0 %v222
    %950 = vmatmul.f32.gmra.mxu0 %v623
    %v951 = vpop.f32.mrf.mxu0
    %v952 = vadd.f32 %v932, %v951
    %953 = vdwg.mxu0
    %954 = vmatpush.msra.mxu0 %v253
    %955 = vmatpush.msra.mxu0 %v252
    %956 = vmatpush.msra.mxu0 %v251
    %957 = vmatpush.msra.mxu0 %v250
    %958 = vmatpush.msra.mxu0 %v249
    %959 = vmatpush.msra.mxu0 %v248
    %960 = vmatpush.msra.mxu0 %v247
    %961 = vmatpush.msra.mxu0 %v246
    %962 = vmatpush.msra.mxu0 %v245
    %963 = vmatpush.msra.mxu0 %v244
    %964 = vmatpush.msra.mxu0 %v243
    %965 = vmatpush.msra.mxu0 %v242
    %966 = vmatpush.msra.mxu0 %v241
    %967 = vmatpush.msra.mxu0 %v240
    %968 = vmatpush.msra.mxu0 %v239
    %969 = vmatpush.msra.mxu0 %v238
    %970 = vmatmul.f32.gmra.mxu0 %v624
    %v971 = vpop.f32.mrf.mxu0
    %v972 = vadd.f32 %v952, %v971
    %973 = vdwg.mxu0
    %974 = vmatpush.msra.mxu0 %v269
    %975 = vmatpush.msra.mxu0 %v268
    %976 = vmatpush.msra.mxu0 %v267
    %977 = vmatpush.msra.mxu0 %v266
    %978 = vmatpush.msra.mxu0 %v265
    %979 = vmatpush.msra.mxu0 %v264
    %980 = vmatpush.msra.mxu0 %v263
    %981 = vmatpush.msra.mxu0 %v262
    %982 = vmatpush.msra.mxu0 %v261
    %983 = vmatpush.msra.mxu0 %v260
    %984 = vmatpush.msra.mxu0 %v259
    %985 = vmatpush.msra.mxu0 %v258
    %986 = vmatpush.msra.mxu0 %v257
    %987 = vmatpush.msra.mxu0 %v256
    %988 = vmatpush.msra.mxu0 %v255
    %989 = vmatpush.msra.mxu0 %v254
    %990 = vmatmul.f32.gmra.mxu0 %v625
    %v991 = vpop.f32.mrf.mxu0
    %v992 = vadd.f32 %v972, %v991
    %993 = vdwg.mxu0
    %994 = vmatpush.msra.mxu0 %v285
    %995 = vmatpush.msra.mxu0 %v284
    %996 = vmatpush.msra.mxu0 %v283
    %997 = vmatpush.msra.mxu0 %v282
    %998 = vmatpush.msra.mxu0 %v281
    %999 = vmatpush.msra.mxu0 %v280
    %1000 = vmatpush.msra.mxu0 %v279
    %1001 = vmatpush.msra.mxu0 %v278
    %1002 = vmatpush.msra.mxu0 %v277
    %1003 = vmatpush.msra.mxu0 %v276
    %1004 = vmatpush.msra.mxu0 %v275
    %1005 = vmatpush.msra.mxu0 %v274
    %1006 = vmatpush.msra.mxu0 %v273
    %1007 = vmatpush.msra.mxu0 %v272
    %1008 = vmatpush.msra.mxu0 %v271
    %1009 = vmatpush.msra.mxu0 %v270
    %1010 = vmatmul.f32.gmra.mxu0 %v626
    %v1011 = vpop.f32.mrf.mxu0
    %v1012 = vadd.f32 %v992, %v1011
    %1013 = vdwg.mxu0
    %1014 = vmatpush.msra.mxu0 %v301
    %1015 = vmatpush.msra.mxu0 %v300
    %1016 = vmatpush.msra.mxu0 %v299
    %1017 = vmatpush.msra.mxu0 %v298
    %1018 = vmatpush.msra.mxu0 %v297
    %1019 = vmatpush.msra.mxu0 %v296
    %1020 = vmatpush.msra.mxu0 %v295
    %1021 = vmatpush.msra.mxu0 %v294
    %1022 = vmatpush.msra.mxu0 %v293
    %1023 = vmatpush.msra.mxu0 %v292
    %1024 = vmatpush.msra.mxu0 %v291
    %1025 = vmatpush.msra.mxu0 %v290
    %1026 = vmatpush.msra.mxu0 %v289
    %1027 = vmatpush.msra.mxu0 %v288
    %1028 = vmatpush.msra.mxu0 %v287
    %1029 = vmatpush.msra.mxu0 %v286
    %1030 = vmatmul.f32.gmra.mxu0 %v629
    %v1031 = vpop.f32.mrf.mxu0
    %v1032 = vadd.f32 %v1012, %v1031
    %1033 = vdwg.mxu0
    %1034 = vmatpush.msra.mxu0 %v317
    %1035 = vmatpush.msra.mxu0 %v316
    %1036 = vmatpush.msra.mxu0 %v315
    %1037 = vmatpush.msra.mxu0 %v314
    %1038 = vmatpush.msra.mxu0 %v313
    %1039 = vmatpush.msra.mxu0 %v312
    %1040 = vmatpush.msra.mxu0 %v311
    %1041 = vmatpush.msra.mxu0 %v310
    %1042 = vmatpush.msra.mxu0 %v309
    %1043 = vmatpush.msra.mxu0 %v308
    %1044 = vmatpush.msra.mxu0 %v307
    %1045 = vmatpush.msra.mxu0 %v306
    %1046 = vmatpush.msra.mxu0 %v305
    %1047 = vmatpush.msra.mxu0 %v304
    %1048 = vmatpush.msra.mxu0 %v303
    %1049 = vmatpush.msra.mxu0 %v302
    %1050 = vmatmul.f32.gmra.mxu0 %v630
    %v1051 = vpop.f32.mrf.mxu0
    %v1052 = vadd.f32 %v1032, %v1051
    %1053 = vdwg.mxu0
    %1054 = vmatpush.msra.mxu0 %v333
    %1055 = vmatpush.msra.mxu0 %v332
    %1056 = vmatpush.msra.mxu0 %v331
    %1057 = vmatpush.msra.mxu0 %v330
    %1058 = vmatpush.msra.mxu0 %v329
    %1059 = vmatpush.msra.mxu0 %v328
    %1060 = vmatpush.msra.mxu0 %v327
    %1061 = vmatpush.msra.mxu0 %v326
    %1062 = vmatpush.msra.mxu0 %v325
    %1063 = vmatpush.msra.mxu0 %v324
    %1064 = vmatpush.msra.mxu0 %v323
    %1065 = vmatpush.msra.mxu0 %v322
    %1066 = vmatpush.msra.mxu0 %v321
    %1067 = vmatpush.msra.mxu0 %v320
    %1068 = vmatpush.msra.mxu0 %v319
    %1069 = vmatpush.msra.mxu0 %v318
    %1070 = vmatmul.f32.gmra.mxu0 %v631
    %v1071 = vpop.f32.mrf.mxu0
    %v1072 = vadd.f32 %v1052, %v1071
    %1073 = vdwg.mxu0
    %1074 = vmatpush.msra.mxu0 %v349
    %1075 = vmatpush.msra.mxu0 %v348
    %1076 = vmatpush.msra.mxu0 %v347
    %1077 = vmatpush.msra.mxu0 %v346
    %1078 = vmatpush.msra.mxu0 %v345
    %1079 = vmatpush.msra.mxu0 %v344
    %1080 = vmatpush.msra.mxu0 %v343
    %1081 = vmatpush.msra.mxu0 %v342
    %1082 = vmatpush.msra.mxu0 %v341
    %1083 = vmatpush.msra.mxu0 %v340
    %1084 = vmatpush.msra.mxu0 %v339
    %1085 = vmatpush.msra.mxu0 %v338
    %1086 = vmatpush.msra.mxu0 %v337
    %1087 = vmatpush.msra.mxu0 %v336
    %1088 = vmatpush.msra.mxu0 %v335
    %1089 = vmatpush.msra.mxu0 %v334
    %1090 = vmatmul.f32.gmra.mxu0 %v632
    %v1091 = vpop.f32.mrf.mxu0
    %v1092 = vadd.f32 %v1072, %v1091
    %1093 = vdwg.mxu0
    %1094 = vmatpush.msra.mxu0 %v365
    %1095 = vmatpush.msra.mxu0 %v364
    %1096 = vmatpush.msra.mxu0 %v363
    %1097 = vmatpush.msra.mxu0 %v362
    %1098 = vmatpush.msra.mxu0 %v361
    %1099 = vmatpush.msra.mxu0 %v360
    %1100 = vmatpush.msra.mxu0 %v359
    %1101 = vmatpush.msra.mxu0 %v358
    %1102 = vmatpush.msra.mxu0 %v357
    %1103 = vmatpush.msra.mxu0 %v356
    %1104 = vmatpush.msra.mxu0 %v355
    %1105 = vmatpush.msra.mxu0 %v354
    %1106 = vmatpush.msra.mxu0 %v353
    %1107 = vmatpush.msra.mxu0 %v352
    %1108 = vmatpush.msra.mxu0 %v351
    %1109 = vmatpush.msra.mxu0 %v350
    %1110 = vmatmul.f32.gmra.mxu0 %v633
    %v1111 = vpop.f32.mrf.mxu0
    %v1112 = vadd.f32 %v1092, %v1111
    %1113 = vdwg.mxu0
    %1114 = vmatpush.msra.mxu0 %v381
    %1115 = vmatpush.msra.mxu0 %v380
    %1116 = vmatpush.msra.mxu0 %v379
    %1117 = vmatpush.msra.mxu0 %v378
    %1118 = vmatpush.msra.mxu0 %v377
    %1119 = vmatpush.msra.mxu0 %v376
    %1120 = vmatpush.msra.mxu0 %v375
    %1121 = vmatpush.msra.mxu0 %v374
    %1122 = vmatpush.msra.mxu0 %v373
    %1123 = vmatpush.msra.mxu0 %v372
    %1124 = vmatpush.msra.mxu0 %v371
    %1125 = vmatpush.msra.mxu0 %v370
    %1126 = vmatpush.msra.mxu0 %v369
    %1127 = vmatpush.msra.mxu0 %v368
    %1128 = vmatpush.msra.mxu0 %v367
    %1129 = vmatpush.msra.mxu0 %v366
    %1130 = vmatmul.f32.gmra.mxu0 %v634
    %v1131 = vpop.f32.mrf.mxu0
    %v1132 = vadd.f32 %v1112, %v1131
    %1133 = vdwg.mxu0
    %1134 = vmatpush.msra.mxu0 %v397
    %1135 = vmatpush.msra.mxu0 %v396
    %1136 = vmatpush.msra.mxu0 %v395
    %1137 = vmatpush.msra.mxu0 %v394
    %1138 = vmatpush.msra.mxu0 %v393
    %1139 = vmatpush.msra.mxu0 %v392
    %1140 = vmatpush.msra.mxu0 %v391
    %1141 = vmatpush.msra.mxu0 %v390
    %1142 = vmatpush.msra.mxu0 %v389
    %1143 = vmatpush.msra.mxu0 %v388
    %1144 = vmatpush.msra.mxu0 %v387
    %1145 = vmatpush.msra.mxu0 %v386
    %1146 = vmatpush.msra.mxu0 %v385
    %1147 = vmatpush.msra.mxu0 %v384
    %1148 = vmatpush.msra.mxu0 %v383
    %1149 = vmatpush.msra.mxu0 %v382
    %1150 = vmatmul.f32.gmra.mxu0 %v635
    %v1151 = vpop.f32.mrf.mxu0
    %v1152 = vadd.f32 %v1132, %v1151
    %1153 = vdwg.mxu0
    %1154 = vmatpush.msra.mxu0 %v413
    %1155 = vmatpush.msra.mxu0 %v412
    %1156 = vmatpush.msra.mxu0 %v411
    %1157 = vmatpush.msra.mxu0 %v410
    %1158 = vmatpush.msra.mxu0 %v409
    %1159 = vmatpush.msra.mxu0 %v408
    %1160 = vmatpush.msra.mxu0 %v407
    %1161 = vmatpush.msra.mxu0 %v406
    %1162 = vmatpush.msra.mxu0 %v405
    %1163 = vmatpush.msra.mxu0 %v404
    %1164 = vmatpush.msra.mxu0 %v403
    %1165 = vmatpush.msra.mxu0 %v402
    %1166 = vmatpush.msra.mxu0 %v401
    %1167 = vmatpush.msra.mxu0 %v400
    %1168 = vmatpush.msra.mxu0 %v399
    %1169 = vmatpush.msra.mxu0 %v398
    %1170 = vmatmul.f32.gmra.mxu0 %v636
    %v1171 = vpop.f32.mrf.mxu0
    %v1172 = vadd.f32 %v1152, %v1171
    %1173 = vdwg.mxu0
    %1174 = vmatpush.msra.mxu0 %v429
    %1175 = vmatpush.msra.mxu0 %v428
    %1176 = vmatpush.msra.mxu0 %v427
    %1177 = vmatpush.msra.mxu0 %v426
    %1178 = vmatpush.msra.mxu0 %v425
    %1179 = vmatpush.msra.mxu0 %v424
    %1180 = vmatpush.msra.mxu0 %v423
    %1181 = vmatpush.msra.mxu0 %v422
    %1182 = vmatpush.msra.mxu0 %v421
    %1183 = vmatpush.msra.mxu0 %v420
    %1184 = vmatpush.msra.mxu0 %v419
    %1185 = vmatpush.msra.mxu0 %v418
    %1186 = vmatpush.msra.mxu0 %v417
    %1187 = vmatpush.msra.mxu0 %v416
    %1188 = vmatpush.msra.mxu0 %v415
    %1189 = vmatpush.msra.mxu0 %v414
    %1190 = vmatmul.f32.gmra.mxu0 %v639
    %v1191 = vpop.f32.mrf.mxu0
    %v1192 = vadd.f32 %v1172, %v1191
    %1193 = vdwg.mxu0
    %1194 = vmatpush.msra.mxu0 %v445
    %1195 = vmatpush.msra.mxu0 %v444
    %1196 = vmatpush.msra.mxu0 %v443
    %1197 = vmatpush.msra.mxu0 %v442
    %1198 = vmatpush.msra.mxu0 %v441
    %1199 = vmatpush.msra.mxu0 %v440
    %1200 = vmatpush.msra.mxu0 %v439
    %1201 = vmatpush.msra.mxu0 %v438
    %1202 = vmatpush.msra.mxu0 %v437
    %1203 = vmatpush.msra.mxu0 %v436
    %1204 = vmatpush.msra.mxu0 %v435
    %1205 = vmatpush.msra.mxu0 %v434
    %1206 = vmatpush.msra.mxu0 %v433
    %1207 = vmatpush.msra.mxu0 %v432
    %1208 = vmatpush.msra.mxu0 %v431
    %1209 = vmatpush.msra.mxu0 %v430
    %1210 = vmatmul.f32.gmra.mxu0 %v640
    %v1211 = vpop.f32.mrf.mxu0
    %v1212 = vadd.f32 %v1192, %v1211
    %1213 = vdwg.mxu0
    %1214 = vmatpush.msra.mxu0 %v461
    %1215 = vmatpush.msra.mxu0 %v460
    %1216 = vmatpush.msra.mxu0 %v459
    %1217 = vmatpush.msra.mxu0 %v458
    %1218 = vmatpush.msra.mxu0 %v457
    %1219 = vmatpush.msra.mxu0 %v456
    %1220 = vmatpush.msra.mxu0 %v455
    %1221 = vmatpush.msra.mxu0 %v454
    %1222 = vmatpush.msra.mxu0 %v453
    %1223 = vmatpush.msra.mxu0 %v452
    %1224 = vmatpush.msra.mxu0 %v451
    %1225 = vmatpush.msra.mxu0 %v450
    %1226 = vmatpush.msra.mxu0 %v449
    %1227 = vmatpush.msra.mxu0 %v448
    %1228 = vmatpush.msra.mxu0 %v447
    %1229 = vmatpush.msra.mxu0 %v446
    %1230 = vmatmul.f32.gmra.mxu0 %v641
    %v1231 = vpop.f32.mrf.mxu0
    %v1232 = vadd.f32 %v1212, %v1231
    %1233 = vdwg.mxu0
    %1234 = vmatpush.msra.mxu0 %v477
    %1235 = vmatpush.msra.mxu0 %v476
    %1236 = vmatpush.msra.mxu0 %v475
    %1237 = vmatpush.msra.mxu0 %v474
    %1238 = vmatpush.msra.mxu0 %v473
    %1239 = vmatpush.msra.mxu0 %v472
    %1240 = vmatpush.msra.mxu0 %v471
    %1241 = vmatpush.msra.mxu0 %v470
    %1242 = vmatpush.msra.mxu0 %v469
    %1243 = vmatpush.msra.mxu0 %v468
    %1244 = vmatpush.msra.mxu0 %v467
    %1245 = vmatpush.msra.mxu0 %v466
    %1246 = vmatpush.msra.mxu0 %v465
    %1247 = vmatpush.msra.mxu0 %v464
    %1248 = vmatpush.msra.mxu0 %v463
    %1249 = vmatpush.msra.mxu0 %v462
    %1250 = vmatmul.f32.gmra.mxu0 %v642
    %v1251 = vpop.f32.mrf.mxu0
    %v1252 = vadd.f32 %v1232, %v1251
    %1253 = vdwg.mxu0
    %1254 = vmatpush.msra.mxu0 %v493
    %1255 = vmatpush.msra.mxu0 %v492
    %1256 = vmatpush.msra.mxu0 %v491
    %1257 = vmatpush.msra.mxu0 %v490
    %1258 = vmatpush.msra.mxu0 %v489
    %1259 = vmatpush.msra.mxu0 %v488
    %1260 = vmatpush.msra.mxu0 %v487
    %1261 = vmatpush.msra.mxu0 %v486
    %1262 = vmatpush.msra.mxu0 %v485
    %1263 = vmatpush.msra.mxu0 %v484
    %1264 = vmatpush.msra.mxu0 %v483
    %1265 = vmatpush.msra.mxu0 %v482
    %1266 = vmatpush.msra.mxu0 %v481
    %1267 = vmatpush.msra.mxu0 %v480
    %1268 = vmatpush.msra.mxu0 %v479
    %1269 = vmatpush.msra.mxu0 %v478
    %1270 = vmatmul.f32.gmra.mxu0 %v643
    %v1271 = vpop.f32.mrf.mxu0
    %v1272 = vadd.f32 %v1252, %v1271
    %1273 = vdwg.mxu0
    %1274 = vmatpush.msra.mxu0 %v509
    %1275 = vmatpush.msra.mxu0 %v508
    %1276 = vmatpush.msra.mxu0 %v507
    %1277 = vmatpush.msra.mxu0 %v506
    %1278 = vmatpush.msra.mxu0 %v505
    %1279 = vmatpush.msra.mxu0 %v504
    %1280 = vmatpush.msra.mxu0 %v503
    %1281 = vmatpush.msra.mxu0 %v502
    %1282 = vmatpush.msra.mxu0 %v501
    %1283 = vmatpush.msra.mxu0 %v500
    %1284 = vmatpush.msra.mxu0 %v499
    %1285 = vmatpush.msra.mxu0 %v498
    %1286 = vmatpush.msra.mxu0 %v497
    %1287 = vmatpush.msra.mxu0 %v496
    %1288 = vmatpush.msra.mxu0 %v495
    %1289 = vmatpush.msra.mxu0 %v494
    %1290 = vmatmul.f32.gmra.mxu0 %v644
    %v1291 = vpop.f32.mrf.mxu0
    %v1292 = vadd.f32 %v1272, %v1291
    %1293 = vdwg.mxu0
    %1294 = vmatpush.msra.mxu0 %v525
    %1295 = vmatpush.msra.mxu0 %v524
    %1296 = vmatpush.msra.mxu0 %v523
    %1297 = vmatpush.msra.mxu0 %v522
    %1298 = vmatpush.msra.mxu0 %v521
    %1299 = vmatpush.msra.mxu0 %v520
    %1300 = vmatpush.msra.mxu0 %v519
    %1301 = vmatpush.msra.mxu0 %v518
    %1302 = vmatpush.msra.mxu0 %v517
    %1303 = vmatpush.msra.mxu0 %v516
    %1304 = vmatpush.msra.mxu0 %v515
    %1305 = vmatpush.msra.mxu0 %v514
    %1306 = vmatpush.msra.mxu0 %v513
    %1307 = vmatpush.msra.mxu0 %v512
    %1308 = vmatpush.msra.mxu0 %v511
    %1309 = vmatpush.msra.mxu0 %v510
    %1310 = vmatmul.f32.gmra.mxu0 %v645
    %v1311 = vpop.f32.mrf.mxu0
    %v1312 = vadd.f32 %v1292, %v1311
    %1313 = vdwg.mxu0
    %1314 = vmatpush.msra.mxu0 %v541
    %1315 = vmatpush.msra.mxu0 %v540
    %1316 = vmatpush.msra.mxu0 %v539
    %1317 = vmatpush.msra.mxu0 %v538
    %1318 = vmatpush.msra.mxu0 %v537
    %1319 = vmatpush.msra.mxu0 %v536
    %1320 = vmatpush.msra.mxu0 %v535
    %1321 = vmatpush.msra.mxu0 %v534
    %1322 = vmatpush.msra.mxu0 %v533
    %1323 = vmatpush.msra.mxu0 %v532
    %1324 = vmatpush.msra.mxu0 %v531
    %1325 = vmatpush.msra.mxu0 %v530
    %1326 = vmatpush.msra.mxu0 %v529
    %1327 = vmatpush.msra.mxu0 %v528
    %1328 = vmatpush.msra.mxu0 %v527
    %1329 = vmatpush.msra.mxu0 %v526
    %1330 = vmatmul.f32.gmra.mxu0 %v646
    %v1331 = vpop.f32.mrf.mxu0
    %v1332 = vadd.f32 %v1312, %v1331
    %1333 = vdwg.mxu0
    %1334 = vmatpush.msra.mxu0 %v557
    %1335 = vmatpush.msra.mxu0 %v556
    %1336 = vmatpush.msra.mxu0 %v555
    %1337 = vmatpush.msra.mxu0 %v554
    %1338 = vmatpush.msra.mxu0 %v553
    %1339 = vmatpush.msra.mxu0 %v552
    %1340 = vmatpush.msra.mxu0 %v551
    %1341 = vmatpush.msra.mxu0 %v550
    %1342 = vmatpush.msra.mxu0 %v549
    %1343 = vmatpush.msra.mxu0 %v548
    %1344 = vmatpush.msra.mxu0 %v547
    %1345 = vmatpush.msra.mxu0 %v546
    %1346 = vmatpush.msra.mxu0 %v545
    %1347 = vmatpush.msra.mxu0 %v544
    %1348 = vmatpush.msra.mxu0 %v543
    %1349 = vmatpush.msra.mxu0 %v542
    %1350 = vmatmul.f32.gmra.mxu0 %v648
    %v1351 = vpop.f32.mrf.mxu0
    %v1352 = vadd.f32 %v1332, %v1351
    %1353 = vdwg.mxu0
    %1354 = vmatpush.msra.mxu0 %v573
    %1355 = vmatpush.msra.mxu0 %v572
    %1356 = vmatpush.msra.mxu0 %v571
    %1357 = vmatpush.msra.mxu0 %v570
    %1358 = vmatpush.msra.mxu0 %v569
    %1359 = vmatpush.msra.mxu0 %v568
    %1360 = vmatpush.msra.mxu0 %v567
    %1361 = vmatpush.msra.mxu0 %v566
    %1362 = vmatpush.msra.mxu0 %v565
    %1363 = vmatpush.msra.mxu0 %v564
    %1364 = vmatpush.msra.mxu0 %v563
    %1365 = vmatpush.msra.mxu0 %v562
    %1366 = vmatpush.msra.mxu0 %v561
    %1367 = vmatpush.msra.mxu0 %v560
    %1368 = vmatpush.msra.mxu0 %v559
    %1369 = vmatpush.msra.mxu0 %v558
    %1370 = vmatmul.f32.gmra.mxu0 %v649
    %v1371 = vpop.f32.mrf.mxu0
    %v1372 = vadd.f32 %v1352, %v1371
    %1373 = vdwg.mxu0
    %1374 = vmatpush.msra.mxu0 %v589
    %1375 = vmatpush.msra.mxu0 %v588
    %1376 = vmatpush.msra.mxu0 %v587
    %1377 = vmatpush.msra.mxu0 %v586
    %1378 = vmatpush.msra.mxu0 %v585
    %1379 = vmatpush.msra.mxu0 %v584
    %1380 = vmatpush.msra.mxu0 %v583
    %1381 = vmatpush.msra.mxu0 %v582
    %1382 = vmatpush.msra.mxu0 %v581
    %1383 = vmatpush.msra.mxu0 %v580
    %1384 = vmatpush.msra.mxu0 %v579
    %1385 = vmatpush.msra.mxu0 %v578
    %1386 = vmatpush.msra.mxu0 %v577
    %1387 = vmatpush.msra.mxu0 %v576
    %1388 = vmatpush.msra.mxu0 %v575
    %1389 = vmatpush.msra.mxu0 %v574
    %1390 = vmatmul.f32.gmra.mxu0 %v650
    %v1391 = vpop.f32.mrf.mxu0
    %v1392 = vadd.f32 %v1372, %v1391
    %1393 = vdwg.mxu0
    %1394 = vmatpush.msra.mxu0 0.0
    %1395 = vmatpush.msra.mxu0 0.0
    %1396 = vmatpush.msra.mxu0 0.0
    %1397 = vmatpush.msra.mxu0 0.0
    %1398 = vmatpush.msra.mxu0 0.0
    %1399 = vmatpush.msra.mxu0 0.0
    %1400 = vmatpush.msra.mxu0 0.0
    %1401 = vmatpush.msra.mxu0 0.0
    %1402 = vmatpush.msra.mxu0 0.0
    %1403 = vmatpush.msra.mxu0 0.0
    %1404 = vmatpush.msra.mxu0 0.0
    %1405 = vmatpush.msra.mxu0 0.0
    %1406 = vmatpush.msra.mxu0 0.0
    %1407 = vmatpush.msra.mxu0 %v692
    %1408 = vmatpush.msra.mxu0 %v591
    %1409 = vmatpush.msra.mxu0 %v590
    %1410 = vmatmul.f32.gmra.mxu0 %v688
    %v1411 = vpop.f32.mrf.mxu0
    %v1412 = vadd.f32 %v1392, %v1411
    %1413 = vdwg.mxu0
    %v1414 = vmax.f32 %v1412, 0.0
    %v1415 = vld [vmem:[%s3] sm:$0xff]
    %v1416 = vld [vmem:[%s3 + $0x8] sm:$0xff]
    %v1417 = vld [vmem:[%s3 + $0x10] sm:$0xff]
    %v1418 = vld [vmem:[%s3 + $0x18] sm:$0xff]
    %v1419 = vld [vmem:[%s4] sm:$0x1]
    %v1421 = vperm.slane %v1419, 0
    %vm1423 = vcmask 261120
    %v1425 = vsel %vm1423, %v1414, 0
    %1427 = vmatpush.msra.mxu0 0.0
    %1428 = vmatpush.msra.mxu0 0.0
    %1429 = vmatpush.msra.mxu0 0.0
    %1430 = vmatpush.msra.mxu0 0.0
    %1431 = vmatpush.msra.mxu0 0.0
    %1432 = vmatpush.msra.mxu0 0.0
    %1433 = vmatpush.msra.mxu0 0.0
    %1434 = vmatpush.msra.mxu0 0.0
    %1435 = vmatpush.msra.mxu0 0.0
    %1436 = vmatpush.msra.mxu0 0.0
    %1437 = vmatpush.msra.mxu0 0.0
    %1438 = vmatpush.msra.mxu0 0.0
    %1439 = vmatpush.msra.mxu0 %v1418
    %1440 = vmatpush.msra.mxu0 %v1417
    %1441 = vmatpush.msra.mxu0 %v1416
    %1442 = vmatpush.msra.mxu0 %v1415
    %1443 = vmatmul.f32.gmra.mxu0 %v1425
    %v1444 = vpop.f32.mrf.mxu0
    %v1445 = vadd.f32 %v1421, %v1444
    %1446 = vdwg.mxu0
    %vm1447 = vcmask 74752
    %1448 = vst.msk [vmem:[#allocation2] sm:$0x3] %vm1447, %v1445
    // Predicated region
    $region22: #{sample_model_forward.5} parent=1 // pred_check
      _
    $region23: #{sample_model_forward.5} parent=1 // pred_check_branch
      %1450 = sbr.rel (0) target = $region25
    $region24: #{sample_model_forward.5} parent=1 // pred_region
      %1452 = vsyncadd [#allocation3], 0
      %s1454 = sshll.u32 [#allocation2], 4
      %s1455 = int_to_ptr.vmem [resolvable:$true] %s1454
      %s1456 = sshll.u32 %s5, 4
      %s1457 = int_to_ptr.hbm [resolvable:$true] %s1456
      %1459 = dma.vmem_to_hbm [thread:$0]  %s1455, 32, %s1457, [#allocation3]
    $region25: #{sample_model_forward.5} parent=1 // pred_fallthru
      _
    // Predicated region
    $region26: #{sample_model_forward.5} parent=1 // pred_check
      _
    $region27: #{sample_model_forward.5} parent=1 // pred_check_branch
      %1461 = sbr.rel (0) target = $region29
    $region28: #{sample_model_forward.5} parent=1 // pred_region
      %1463 = dma.done [#allocation3], 32
    $region29: #{sample_model_forward.5} parent=1 // pred_fallthru
      _
    %1464 = vsyncpa [#allocation3], 1

</llo_original>
